<compile_context>
chip_gen: v6e
topology: v6e:2x2x1
jax: 0.10.0
libtpu: 0.0.40
codegen_flags: <defaults>
</compile_context>

<pallas_src>
import jax
import jax.numpy as jnp
import numpy as np
from jax.experimental import pallas as pl
from jax.experimental.pallas import tpu as pltpu

N_BATCH = 2
H0 = W0 = 16          # input spatial
C0 = 3                # input channels
C1 = 16               # conv1 out channels
H1 = W1 = 8           # after pool1
C2 = 4                # conv2 out channels
H2 = W2 = 4           # after pool2 (latent z)
T1C = 16              # t_conv1 out channels
T2C = 3               # t_conv2 out channels

IN_LANES = 128                         # x lanes (w0, c0): 48 real, zero-padded to 128
OUT_LANES = 2 * 2 * W2 * 2 * 2 * T2C   # 192 real output lanes (r, W, c)
OUT_LANES_PAD = 256                    # padded so the final store is lane-dense


# ------------------------------ in-kernel helpers ------------------------------

def _shift_rows(a, h_period, direction):
    """Whole-slab row shift with per-image zero boundary (rows are (n, h), h minor).

    direction=+1: out[r] = a[r-1] (zero where h == 0)
    direction=-1: out[r] = a[r+1] (zero where h == h_period-1)
    One XLU roll + one VPU select, independent of batch size.
    """
    rows = a.shape[0]
    rolled = pltpu.roll(a, shift=direction % rows, axis=0)
    h = jax.lax.broadcasted_iota(jnp.int32, (rows, 1), 0) & (h_period - 1)
    boundary = (h == 0) if direction > 0 else (h == h_period - 1)
    return jnp.where(boundary, jnp.zeros((), a.dtype), rolled)


def _roll_lanes_left(a, c):
    """out[:, j] = a[:, j + c] (wrapped) — used for the 2x2-pool max along W."""
    lanes = a.shape[1]
    return pltpu.roll(a, shift=(lanes - c) % lanes, axis=1)


def _pool_rows(a, rows_out):
    """Max over adjacent row pairs + row compaction via two 0/1 selection matmuls.

    out[r] = max(a[2r], a[2r+1]).  Row pairs never straddle an image boundary because
    every per-image row count is even.  The selection rides the otherwise idle MXU.
    """
    rows_in = a.shape[0]
    r = jax.lax.broadcasted_iota(jnp.int32, (rows_out, rows_in), 0)
    c = jax.lax.broadcasted_iota(jnp.int32, (rows_out, rows_in), 1)
    sel_e = jnp.where(c == 2 * r, 1.0, 0.0).astype(a.dtype)
    sel_o = jnp.where(c == 2 * r + 1, 1.0, 0.0).astype(a.dtype)
    even = jnp.dot(sel_e, a, preferred_element_type=jnp.float32)
    odd = jnp.dot(sel_o, a, preferred_element_type=jnp.float32)
    return jnp.maximum(even, odd)


# ----------------------------------- kernel ------------------------------------

def _fused_forward_kernel(x_ref, w1_ref, b1_ref, w2_ref, b2_ref,
                          t1_ref, tb1_ref, t2_ref, tb2_ref, zsel_ref,
                          out_ref, z_ref):
    f32, bf16 = jnp.float32, jnp.bfloat16
    m16 = x_ref.shape[0]              # n_blk * 16 rows
    m8, m4 = m16 // 2, m16 // 4

    # ---- conv1 (3x3, pad=1) + ReLU: one MXU matmul over 3 kh-shifted slabs --------
    x = x_ref[...]                                                     # (m16, 128) f32
    lhs1 = jnp.concatenate(
        [_shift_rows(x, H0, +1), x, _shift_rows(x, H0, -1)], axis=1)   # (m16, 384)
    a1 = jnp.dot(lhs1.astype(bf16), w1_ref[...],
                 preferred_element_type=f32) + b1_ref[...]
    a1 = jnp.maximum(a1, 0.0)                                          # (m16, 256) lanes (w0, c1)

    # ---- pool1 (2x2): W = lane roll + max; H = selection matmuls.  The slab stays
    #      uncompacted in W (odd-w lane blocks are junk) — packed w2 has zero rows there.
    wm1 = jnp.maximum(a1, _roll_lanes_left(a1, C1))
    p1 = _pool_rows(wm1.astype(bf16), m8)                              # (m8, 256) f32

    # ---- conv2 (3x3, pad=1) + ReLU (pool1 W-compaction folded into packed w2) -----
    lhs2 = jnp.concatenate(
        [_shift_rows(p1, H1, +1), p1, _shift_rows(p1, H1, -1)], axis=1)  # (m8, 768)
    a2 = jnp.dot(lhs2.astype(bf16), w2_ref[...],
                 preferred_element_type=f32) + b2_ref[...]
    a2 = jnp.maximum(a2, 0.0)                                          # (m8, 32) lanes (w1, c2)

    # ---- pool2 (2x2) -> latent (uncompacted in W; odd-w1 junk zeroed in t1 / zsel) --
    wm2 = jnp.maximum(a2, _roll_lanes_left(a2, C2))
    zu = _pool_rows(wm2.astype(bf16), m4)                              # (m4, 32) f32
    zub = zu.astype(bf16)
    z_ref[...] = jnp.dot(zub, zsel_ref[...], preferred_element_type=f32)   # (m4, 16)

    # ---- t_conv1 (2x2, s=2) + ReLU: one block-diagonal matmul ----------------------
    h1 = jnp.dot(zub, t1_ref[...], preferred_element_type=f32) + tb1_ref[...]
    h1 = jnp.maximum(h1, 0.0)                                          # (m4, 256)

    # ---- t_conv2 (2x2, s=2) + sigmoid: one matmul, output padded to 256 lanes ------
    pre = jnp.dot(h1.astype(bf16), t2_ref[...],
                  preferred_element_type=f32) + tb2_ref[...]
    # sigmoid(x) = 0.5*(tanh(x/2)+1): the transcendental runs on the EUP, no VPU divide.
    out_ref[...] = 0.5 * (jnp.tanh(0.5 * pre) + 1.0)                   # (m4, 256)


# ------------------------------- pallas wrapper --------------------------------

def _fused_pallas_call(x2d, pk, n_blk):
    n_pad = x2d.shape[0] // H0
    grid = (n_pad // n_blk,)

    def resident(arr):
        # Small packed weight / bias slab: same block every grid step -> stays in VMEM.
        return pl.BlockSpec(arr.shape, lambda i: (0,) * arr.ndim)

    in_specs = [pl.BlockSpec((n_blk * H0, IN_LANES), lambda i: (i, 0))] + [
        resident(pk[k]) for k in
        ("w1", "b1", "w2", "b2", "t1", "tb1", "t2", "tb2", "zsel")]
    out_specs = (
        pl.BlockSpec((n_blk * H2, OUT_LANES_PAD), lambda i: (i, 0)),
        pl.BlockSpec((n_blk * H2, W2 * C2), lambda i: (i, 0)),
    )
    return pl.pallas_call(
        _fused_forward_kernel,
        grid=grid,
        in_specs=in_specs,
        out_specs=out_specs,
        out_shape=(
            jax.ShapeDtypeStruct((n_pad * H2, OUT_LANES_PAD), jnp.float32),
            jax.ShapeDtypeStruct((n_pad * H2, W2 * C2), jnp.float32),
        ),
        compiler_params=pltpu.CompilerParams(
            dimension_semantics=("parallel",)),   # v7x: batch blocks across both TCs
    )(x2d, pk["w1"], pk["b1"], pk["w2"], pk["b2"],
      pk["t1"], pk["tb1"], pk["t2"], pk["tb2"], pk["zsel"])


@jax.jit
def autoencoder_conv_forward(x_nchw, packed):
    """AutoencoderConv.forward: (N, 3, 16, 16) NCHW -> (out NCHW, z NCHW)."""
    n = x_nchw.shape[0]
    n_blk = min(8, n)                       # matmul M per grid step: 128/64/32 at n_blk=8
    n_pad = ((n + n_blk - 1) // n_blk) * n_blk
    x2d = jnp.transpose(x_nchw, (0, 2, 3, 1)).astype(jnp.float32).reshape(n * H0, W0 * C0)
    x2d = jnp.pad(x2d, ((0, (n_pad - n) * H0), (0, IN_LANES - W0 * C0)))
    out2d, z2d = _fused_pallas_call(x2d, packed, n_blk)
    out2d = out2d[: n * H2, :OUT_LANES]
    z2d = z2d[: n * H2, :]
    out = (out2d.reshape(n, H2, 4, W0, T2C)     # (n, h2, r, W, c); image row = 4*h2 + r
                 .transpose(0, 4, 1, 2, 3)
                 .reshape(n, T2C, H0, W0))      # NCHW
    z = z2d.reshape(n, H2, W2, C2).transpose(0, 3, 1, 2)   # NCHW
    return out, z


# ------------------------------ params & packing -------------------------------

def init_params(key):
    def uinit(k, shape, fan_in):
        bound = 1.0 / np.sqrt(float(fan_in))
        return jax.random.uniform(k, shape, jnp.float32, -bound, bound)
    ks = jax.random.split(key, 8)
    return {
        "w1": uinit(ks[0], (C1, C0, 3, 3), C0 * 9),     # Conv2d(3, 16, 3, pad=1)
        "b1": uinit(ks[1], (C1,), C0 * 9),
        "w2": uinit(ks[2], (C2, C1, 3, 3), C1 * 9),     # Conv2d(16, 4, 3, pad=1)
        "b2": uinit(ks[3], (C2,), C1 * 9),
        "tw1": uinit(ks[4], (C2, T1C, 2, 2), C2 * 4),   # ConvTranspose2d(4, 16, 2, s=2)
        "tb1": uinit(ks[5], (T1C,), C2 * 4),
        "tw2": uinit(ks[6], (T1C, T2C, 2, 2), T1C * 4), # ConvTranspose2d(16, 3, 2, s=2)
        "tb2": uinit(ks[7], (T2C,), T1C * 4),
    }


def pack_params(p):
    """One-time packing of PyTorch-layout weights into lane-major bf16 matmul slabs."""
    bf16 = jnp.bfloat16

    def band(width):
        # s[kw, w_out, w_in] for a stride-1 'same' 3-tap conv on a compact-lane input.
        s = np.zeros((3, width, width), np.float32)
        for kw in range(3):
            for wo in range(width):
                wi = wo + kw - 1
                if 0 <= wi < width:
                    s[kw, wo, wi] = 1.0
        return jnp.asarray(s)

    def band_pooled(width_out, width_in):
        # Same, but the input lanes are 2x2-pool-uncompacted: valid pixels sit at
        # w_in = 2*(w_out + kw - 1); odd-w_in rows stay zero (pool W-compaction folded in).
        s = np.zeros((3, width_out, width_in), np.float32)
        for kw in range(3):
            for wo in range(width_out):
                wi = wo + kw - 1
                if 0 <= wi < width_out:
                    s[kw, wo, 2 * wi] = 1.0
        return jnp.asarray(s)

    # conv1: rows (kh, w_in, c0) zero-padded to (kh, 128); cols (w_out, c1).
    m1 = jnp.einsum("uwv,ochu->hvcwo", band(W0), p["w1"]).reshape(3, W0 * C0, W0 * C1)
    w1p = jnp.pad(m1, ((0, 0), (0, IN_LANES - W0 * C0), (0, 0))).reshape(3 * IN_LANES, W0 * C1)

    # conv2: rows (kh, w0_in, c1) with w0_in uncompacted; cols (w1_out, c2).
    m2 = jnp.einsum("uwv,ochu->hvcwo", band_pooled(W1, W0), p["w2"]).reshape(3, W0 * C1, W1 * C2)
    w2p = m2.reshape(3 * W0 * C1, W1 * C2)

    # Selection of even-w1 lanes of the uncompacted latent slab.
    e84 = np.zeros((W1, W2), np.float32)
    for w in range(W2):
        e84[2 * w, w] = 1.0
    e84 = jnp.asarray(e84)

    # t_conv1: rows = uncompacted z lanes (w1_in, c2); cols (i1, w2, j1, c_t1).
    t1p = jnp.einsum("vw,acij->vaiwjc", e84, p["tw1"]).reshape(W1 * C2, 2 * W2 * 2 * T1C)
    # z lane compaction: rows = uncompacted z lanes; cols = compact (w2, c2).
    zselp = jnp.einsum("vw,ac->vawc", e84, jnp.eye(C2, dtype=jnp.float32)).reshape(W1 * C2, W2 * C2)

    # t_conv2: rows (i1, w2, j1, c_t1); cols (i1, i2, w2, j1, j2, c) padded 192 -> 256.
    e2 = jnp.eye(2, dtype=jnp.float32)
    e4 = jnp.eye(W2, dtype=jnp.float32)
    t2p = jnp.einsum("IA,WB,JC,acij->IWJaAiBCjc", e2, e4, e2, p["tw2"])
    t2p = t2p.reshape(2 * W2 * 2 * T1C, OUT_LANES)
    t2p = jnp.pad(t2p, ((0, 0), (0, OUT_LANES_PAD - OUT_LANES)))

    return {
        "w1": w1p.astype(bf16),                                             # (384, 256)
        "b1": jnp.tile(p["b1"], W0).reshape(1, W0 * C1),                    # (1, 256) f32
        "w2": w2p.astype(bf16),                                             # (768, 32)
        "b2": jnp.tile(p["b2"], W1).reshape(1, W1 * C2),                    # (1, 32)
        "t1": t1p.astype(bf16),                                             # (32, 256)
        "tb1": jnp.tile(p["tb1"], 2 * W2 * 2).reshape(1, 2 * W2 * 2 * T1C), # (1, 256)
        "t2": t2p.astype(bf16),                                             # (256, 256)
        "tb2": jnp.pad(jnp.tile(p["tb2"], 2 * 2 * W2 * 2 * 2).reshape(1, OUT_LANES),
                       ((0, 0), (0, OUT_LANES_PAD - OUT_LANES))),           # (1, 256)
        "zsel": zselp.astype(bf16),                                         # (32, 16)
    }


# ------------------------------ plain-JAX reference -----------------------------

def _ref_forward(x_nchw, p):
    x = jnp.transpose(x_nchw, (0, 2, 3, 1)).astype(jnp.float32)   # NHWC

    def conv3x3(xx, w, b):
        n, h, ww, _ = xx.shape
        xp = jnp.pad(xx, ((0, 0), (1, 1), (1, 1), (0, 0)))
        acc = jnp.zeros((n, h, ww, w.shape[0]), jnp.float32)
        for kh in range(3):
            for kw in range(3):
                acc = acc + jnp.einsum("nhwc,oc->nhwo",
                                       xp[:, kh:kh + h, kw:kw + ww, :],
                                       w[:, :, kh, kw], precision="highest")
        return acc + b

    def pool(xx):
        n, h, ww, c = xx.shape
        return xx.reshape(n, h // 2, 2, ww // 2, 2, c).max(axis=(2, 4))

    def tconv2x2(xx, w, b):
        n, h, ww, _ = xx.shape
        co = w.shape[1]
        y = jnp.einsum("nhwa,acij->nhiwjc", xx, w, precision="highest")
        return y.reshape(n, 2 * h, 2 * ww, co) + b

    a1 = jax.nn.relu(conv3x3(x, p["w1"], p["b1"]))
    p1 = pool(a1)
    a2 = jax.nn.relu(conv3x3(p1, p["w2"], p["b2"]))
    z = pool(a2)
    h1 = jax.nn.relu(tconv2x2(z, p["tw1"], p["tb1"]))
    out = jax.nn.sigmoid(tconv2x2(h1, p["tw2"], p["tb2"]))
    return jnp.transpose(out, (0, 3, 1, 2)), jnp.transpose(z, (0, 3, 1, 2))


# ------------------------------------ main --------------------------------------

if __name__ == "__main__":
    key = jax.random.PRNGKey(0)
    pkey, xkey = jax.random.split(key)
    params = init_params(pkey)
    packed = pack_params(params)                                  # one-time weight packing
    x = jax.random.uniform(xkey, (N_BATCH, C0, H0, W0), jnp.float32)   # NCHW input

    out, z = autoencoder_conv_forward(x, packed)
    out, z = jax.block_until_ready((out, z))

    assert out.shape == (N_BATCH, T2C, H0, W0), out.shape
    assert z.shape == (N_BATCH, C2, H2, W2), z.shape
    assert bool(jnp.isfinite(out).all()) and bool(jnp.isfinite(z).all())
    assert bool((out >= 0.0).all()) and bool((out <= 1.0).all())   # sigmoid range

    # Cross-check against a plain-JAX (f32, highest-precision) reference of the module.
    # The kernel feeds the MXU bf16 operands (f32 accumulation), hence the 2e-2 tolerance.
    out_r, z_r = _ref_forward(x, params)
    assert bool(jnp.allclose(out, out_r, atol=2e-2, rtol=2e-2)), \
        float(jnp.max(jnp.abs(out - out_r)))
    assert bool(jnp.allclose(z, z_r, atol=2e-2, rtol=2e-2)), \
        float(jnp.max(jnp.abs(z - z_r)))

    print("KERNEL_OK")
</pallas_src>

<mosaic_0001>
module attributes {stable_mosaic.version = 11 : i64} {
  func.func @_fused_forward_kernel(%arg0: i32, %arg1: memref<32x128xf32, #tpu.memory_space<vmem>>, %arg2: memref<384x256xbf16, #tpu.memory_space<vmem>>, %arg3: memref<1x256xf32, #tpu.memory_space<vmem>>, %arg4: memref<768x32xbf16, #tpu.memory_space<vmem>>, %arg5: memref<1x32xf32, #tpu.memory_space<vmem>>, %arg6: memref<32x256xbf16, #tpu.memory_space<vmem>>, %arg7: memref<1x256xf32, #tpu.memory_space<vmem>>, %arg8: memref<256x256xbf16, #tpu.memory_space<vmem>>, %arg9: memref<1x256xf32, #tpu.memory_space<vmem>>, %arg10: memref<32x16xbf16, #tpu.memory_space<vmem>>, %arg11: memref<8x256xf32, #tpu.memory_space<vmem>>, %arg12: memref<8x16xf32, #tpu.memory_space<vmem>>) attributes {dimension_semantics = [#tpu.dimension_semantics<parallel>], iteration_bounds = array<i64: 1>, scalar_prefetch = 0 : i64, scratch_operands = 0 : i64, tpu.core_type = #tpu.core_type<tc>, window_params = [{transform_indices = @transform_0, window_bounds = array<i64: 32, 128>}, {pipeline_mode = #tpu.pipeline_mode<synchronous>, transform_indices = @transform_1, window_bounds = array<i64: 384, 256>}, {pipeline_mode = #tpu.pipeline_mode<synchronous>, transform_indices = @transform_2, window_bounds = array<i64: 1, 256>}, {pipeline_mode = #tpu.pipeline_mode<synchronous>, transform_indices = @transform_3, window_bounds = array<i64: 768, 32>}, {pipeline_mode = #tpu.pipeline_mode<synchronous>, transform_indices = @transform_4, window_bounds = array<i64: 1, 32>}, {pipeline_mode = #tpu.pipeline_mode<synchronous>, transform_indices = @transform_5, window_bounds = array<i64: 32, 256>}, {pipeline_mode = #tpu.pipeline_mode<synchronous>, transform_indices = @transform_6, window_bounds = array<i64: 1, 256>}, {pipeline_mode = #tpu.pipeline_mode<synchronous>, transform_indices = @transform_7, window_bounds = array<i64: 256, 256>}, {pipeline_mode = #tpu.pipeline_mode<synchronous>, transform_indices = @transform_8, window_bounds = array<i64: 1, 256>}, {pipeline_mode = #tpu.pipeline_mode<synchronous>, transform_indices = @transform_9, window_bounds = array<i64: 32, 16>}, {transform_indices = @transform_10, window_bounds = array<i64: 8, 256>}, {transform_indices = @transform_11, window_bounds = array<i64: 8, 16>}]} {
    %c0 = arith.constant 0 : index
    %c0_0 = arith.constant 0 : index
    %0 = vector.load %arg1[%c0, %c0_0] : memref<32x128xf32, #tpu.memory_space<vmem>>, vector<32x128xf32>
    %c1_i32 = arith.constant 1 : i32
    %1 = tpu.dynamic_rotate %0 by %c1_i32 dim 0 : vector<32x128xf32>, i32 -> vector<32x128xf32>
    %2 = tpu.iota {dimensions = array<i32: 0>} : vector<32x1xi32>
    %c15_i32 = arith.constant 15 : i32
    %3 = vector.broadcast %c15_i32 : i32 to vector<32x1xi32>
    %4 = arith.andi %2, %3 : vector<32x1xi32>
    %c0_i32 = arith.constant 0 : i32
    %5 = vector.broadcast %c0_i32 : i32 to vector<32x1xi32>
    %6 = arith.cmpi eq, %4, %5 : vector<32x1xi32>
    %cst = arith.constant 0.000000e+00 : f32
    %7 = vector.shape_cast %6 : vector<32x1xi1> to vector<32x1xi1>
    %8 = vector.broadcast %7 : vector<32x1xi1> to vector<32x128xi1>
    %9 = vector.broadcast %cst : f32 to vector<32x128xf32>
    %10 = arith.select %8, %9, %1 : vector<32x128xi1>, vector<32x128xf32>
    %c31_i32 = arith.constant 31 : i32
    %11 = tpu.dynamic_rotate %0 by %c31_i32 dim 0 : vector<32x128xf32>, i32 -> vector<32x128xf32>
    %12 = tpu.iota {dimensions = array<i32: 0>} : vector<32x1xi32>
    %c15_i32_1 = arith.constant 15 : i32
    %13 = vector.broadcast %c15_i32_1 : i32 to vector<32x1xi32>
    %14 = arith.andi %12, %13 : vector<32x1xi32>
    %c15_i32_2 = arith.constant 15 : i32
    %15 = vector.broadcast %c15_i32_2 : i32 to vector<32x1xi32>
    %16 = arith.cmpi eq, %14, %15 : vector<32x1xi32>
    %cst_3 = arith.constant 0.000000e+00 : f32
    %17 = vector.shape_cast %16 : vector<32x1xi1> to vector<32x1xi1>
    %18 = vector.broadcast %17 : vector<32x1xi1> to vector<32x128xi1>
    %19 = vector.broadcast %cst_3 : f32 to vector<32x128xf32>
    %20 = arith.select %18, %19, %11 : vector<32x128xi1>, vector<32x128xf32>
    %21 = tpu.concatenate %10, %0, %20 in 1 : vector<32x128xf32>, vector<32x128xf32>, vector<32x128xf32> -> vector<32x384xf32>
    %22 = arith.truncf %21 : vector<32x384xf32> to vector<32x384xbf16>
    %c0_4 = arith.constant 0 : index
    %c0_5 = arith.constant 0 : index
    %23 = vector.load %arg2[%c0_4, %c0_5] : memref<384x256xbf16, #tpu.memory_space<vmem>>, vector<384x256xbf16>
    %cst_6 = arith.constant dense<0.000000e+00> : vector<32x256xf32>
    %24 = tpu.matmul %22, %23, %cst_6 {dimension_numbers = #tpu.dot_dimension_numbers<[1], [0], [0], [1], [0, 0, 1, 1], [], []>} : vector<32x384xbf16>, vector<384x256xbf16>, vector<32x256xf32> -> vector<32x256xf32>
    %c0_7 = arith.constant 0 : index
    %c0_8 = arith.constant 0 : index
    %25 = vector.load %arg3[%c0_7, %c0_8] : memref<1x256xf32, #tpu.memory_space<vmem>>, vector<1x256xf32>
    %26 = vector.broadcast %25 : vector<1x256xf32> to vector<32x256xf32>
    %27 = arith.addf %24, %26 : vector<32x256xf32>
    %cst_9 = arith.constant 0.000000e+00 : f32
    %28 = vector.broadcast %cst_9 : f32 to vector<32x256xf32>
    %29 = arith.maximumf %27, %28 : vector<32x256xf32>
    %c240_i32 = arith.constant 240 : i32
    %30 = tpu.dynamic_rotate %29 by %c240_i32 dim 1 : vector<32x256xf32>, i32 -> vector<32x256xf32>
    %31 = arith.maximumf %29, %30 : vector<32x256xf32>
    %32 = arith.truncf %31 : vector<32x256xf32> to vector<32x256xbf16>
    %33 = tpu.iota {dimensions = array<i32: 0>} : vector<16x32xi32>
    %34 = tpu.iota {dimensions = array<i32: 1>} : vector<16x32xi32>
    %c2_i32 = arith.constant 2 : i32
    %35 = vector.broadcast %c2_i32 : i32 to vector<16x32xi32>
    %36 = arith.muli %35, %33 : vector<16x32xi32>
    %37 = arith.cmpi eq, %34, %36 : vector<16x32xi32>
    %cst_10 = arith.constant 1.000000e+00 : f32
    %cst_11 = arith.constant 0.000000e+00 : f32
    %38 = vector.broadcast %cst_10 : f32 to vector<16x32xf32>
    %39 = vector.broadcast %cst_11 : f32 to vector<16x32xf32>
    %40 = arith.select %37, %38, %39 : vector<16x32xi1>, vector<16x32xf32>
    %41 = arith.truncf %40 : vector<16x32xf32> to vector<16x32xbf16>
    %c2_i32_12 = arith.constant 2 : i32
    %42 = vector.broadcast %c2_i32_12 : i32 to vector<16x32xi32>
    %43 = arith.muli %42, %33 : vector<16x32xi32>
    %c1_i32_13 = arith.constant 1 : i32
    %44 = vector.broadcast %c1_i32_13 : i32 to vector<16x32xi32>
    %45 = arith.addi %43, %44 : vector<16x32xi32>
    %46 = arith.cmpi eq, %34, %45 : vector<16x32xi32>
    %cst_14 = arith.constant 1.000000e+00 : f32
    %cst_15 = arith.constant 0.000000e+00 : f32
    %47 = vector.broadcast %cst_14 : f32 to vector<16x32xf32>
    %48 = vector.broadcast %cst_15 : f32 to vector<16x32xf32>
    %49 = arith.select %46, %47, %48 : vector<16x32xi1>, vector<16x32xf32>
    %50 = arith.truncf %49 : vector<16x32xf32> to vector<16x32xbf16>
    %cst_16 = arith.constant dense<0.000000e+00> : vector<16x256xf32>
    %51 = tpu.matmul %41, %32, %cst_16 {dimension_numbers = #tpu.dot_dimension_numbers<[1], [0], [0], [1], [0, 0, 1, 1], [], []>} : vector<16x32xbf16>, vector<32x256xbf16>, vector<16x256xf32> -> vector<16x256xf32>
    %cst_17 = arith.constant dense<0.000000e+00> : vector<16x256xf32>
    %52 = tpu.matmul %50, %32, %cst_17 {dimension_numbers = #tpu.dot_dimension_numbers<[1], [0], [0], [1], [0, 0, 1, 1], [], []>} : vector<16x32xbf16>, vector<32x256xbf16>, vector<16x256xf32> -> vector<16x256xf32>
    %53 = arith.maximumf %51, %52 : vector<16x256xf32>
    %c1_i32_18 = arith.constant 1 : i32
    %54 = tpu.dynamic_rotate %53 by %c1_i32_18 dim 0 : vector<16x256xf32>, i32 -> vector<16x256xf32>
    %55 = tpu.iota {dimensions = array<i32: 0>} : vector<16x1xi32>
    %c7_i32 = arith.constant 7 : i32
    %56 = vector.broadcast %c7_i32 : i32 to vector<16x1xi32>
    %57 = arith.andi %55, %56 : vector<16x1xi32>
    %c0_i32_19 = arith.constant 0 : i32
    %58 = vector.broadcast %c0_i32_19 : i32 to vector<16x1xi32>
    %59 = arith.cmpi eq, %57, %58 : vector<16x1xi32>
    %cst_20 = arith.constant 0.000000e+00 : f32
    %60 = vector.shape_cast %59 : vector<16x1xi1> to vector<16x1xi1>
    %61 = vector.broadcast %60 : vector<16x1xi1> to vector<16x256xi1>
    %62 = vector.broadcast %cst_20 : f32 to vector<16x256xf32>
    %63 = arith.select %61, %62, %54 : vector<16x256xi1>, vector<16x256xf32>
    %c15_i32_21 = arith.constant 15 : i32
    %64 = tpu.dynamic_rotate %53 by %c15_i32_21 dim 0 : vector<16x256xf32>, i32 -> vector<16x256xf32>
    %65 = tpu.iota {dimensions = array<i32: 0>} : vector<16x1xi32>
    %c7_i32_22 = arith.constant 7 : i32
    %66 = vector.broadcast %c7_i32_22 : i32 to vector<16x1xi32>
    %67 = arith.andi %65, %66 : vector<16x1xi32>
    %c7_i32_23 = arith.constant 7 : i32
    %68 = vector.broadcast %c7_i32_23 : i32 to vector<16x1xi32>
    %69 = arith.cmpi eq, %67, %68 : vector<16x1xi32>
    %cst_24 = arith.constant 0.000000e+00 : f32
    %70 = vector.shape_cast %69 : vector<16x1xi1> to vector<16x1xi1>
    %71 = vector.broadcast %70 : vector<16x1xi1> to vector<16x256xi1>
    %72 = vector.broadcast %cst_24 : f32 to vector<16x256xf32>
    %73 = arith.select %71, %72, %64 : vector<16x256xi1>, vector<16x256xf32>
    %74 = tpu.concatenate %63, %53, %73 in 1 : vector<16x256xf32>, vector<16x256xf32>, vector<16x256xf32> -> vector<16x768xf32>
    %75 = arith.truncf %74 : vector<16x768xf32> to vector<16x768xbf16>
    %c0_25 = arith.constant 0 : index
    %c0_26 = arith.constant 0 : index
    %76 = vector.load %arg4[%c0_25, %c0_26] : memref<768x32xbf16, #tpu.memory_space<vmem>>, vector<768x32xbf16>
    %cst_27 = arith.constant dense<0.000000e+00> : vector<16x32xf32>
    %77 = tpu.matmul %75, %76, %cst_27 {dimension_numbers = #tpu.dot_dimension_numbers<[1], [0], [0], [1], [0, 0, 1, 1], [], []>} : vector<16x768xbf16>, vector<768x32xbf16>, vector<16x32xf32> -> vector<16x32xf32>
    %c0_28 = arith.constant 0 : index
    %c0_29 = arith.constant 0 : index
    %78 = vector.load %arg5[%c0_28, %c0_29] : memref<1x32xf32, #tpu.memory_space<vmem>>, vector<1x32xf32>
    %79 = vector.broadcast %78 : vector<1x32xf32> to vector<16x32xf32>
    %80 = arith.addf %77, %79 : vector<16x32xf32>
    %cst_30 = arith.constant 0.000000e+00 : f32
    %81 = vector.broadcast %cst_30 : f32 to vector<16x32xf32>
    %82 = arith.maximumf %80, %81 : vector<16x32xf32>
    %c28_i32 = arith.constant 28 : i32
    %83 = tpu.dynamic_rotate %82 by %c28_i32 dim 1 : vector<16x32xf32>, i32 -> vector<16x32xf32>
    %84 = arith.maximumf %82, %83 : vector<16x32xf32>
    %85 = arith.truncf %84 : vector<16x32xf32> to vector<16x32xbf16>
    %86 = tpu.iota {dimensions = array<i32: 0>} : vector<8x16xi32>
    %87 = tpu.iota {dimensions = array<i32: 1>} : vector<8x16xi32>
    %c2_i32_31 = arith.constant 2 : i32
    %88 = vector.broadcast %c2_i32_31 : i32 to vector<8x16xi32>
    %89 = arith.muli %88, %86 : vector<8x16xi32>
    %90 = arith.cmpi eq, %87, %89 : vector<8x16xi32>
    %cst_32 = arith.constant 1.000000e+00 : f32
    %cst_33 = arith.constant 0.000000e+00 : f32
    %91 = vector.broadcast %cst_32 : f32 to vector<8x16xf32>
    %92 = vector.broadcast %cst_33 : f32 to vector<8x16xf32>
    %93 = arith.select %90, %91, %92 : vector<8x16xi1>, vector<8x16xf32>
    %94 = arith.truncf %93 : vector<8x16xf32> to vector<8x16xbf16>
    %c2_i32_34 = arith.constant 2 : i32
    %95 = vector.broadcast %c2_i32_34 : i32 to vector<8x16xi32>
    %96 = arith.muli %95, %86 : vector<8x16xi32>
    %c1_i32_35 = arith.constant 1 : i32
    %97 = vector.broadcast %c1_i32_35 : i32 to vector<8x16xi32>
    %98 = arith.addi %96, %97 : vector<8x16xi32>
    %99 = arith.cmpi eq, %87, %98 : vector<8x16xi32>
    %cst_36 = arith.constant 1.000000e+00 : f32
    %cst_37 = arith.constant 0.000000e+00 : f32
    %100 = vector.broadcast %cst_36 : f32 to vector<8x16xf32>
    %101 = vector.broadcast %cst_37 : f32 to vector<8x16xf32>
    %102 = arith.select %99, %100, %101 : vector<8x16xi1>, vector<8x16xf32>
    %103 = arith.truncf %102 : vector<8x16xf32> to vector<8x16xbf16>
    %cst_38 = arith.constant dense<0.000000e+00> : vector<8x32xf32>
    %104 = tpu.matmul %94, %85, %cst_38 {dimension_numbers = #tpu.dot_dimension_numbers<[1], [0], [0], [1], [0, 0, 1, 1], [], []>} : vector<8x16xbf16>, vector<16x32xbf16>, vector<8x32xf32> -> vector<8x32xf32>
    %cst_39 = arith.constant dense<0.000000e+00> : vector<8x32xf32>
    %105 = tpu.matmul %103, %85, %cst_39 {dimension_numbers = #tpu.dot_dimension_numbers<[1], [0], [0], [1], [0, 0, 1, 1], [], []>} : vector<8x16xbf16>, vector<16x32xbf16>, vector<8x32xf32> -> vector<8x32xf32>
    %106 = arith.maximumf %104, %105 : vector<8x32xf32>
    %107 = arith.truncf %106 : vector<8x32xf32> to vector<8x32xbf16>
    %c0_40 = arith.constant 0 : index
    %c0_41 = arith.constant 0 : index
    %108 = vector.load %arg10[%c0_40, %c0_41] : memref<32x16xbf16, #tpu.memory_space<vmem>>, vector<32x16xbf16>
    %cst_42 = arith.constant dense<0.000000e+00> : vector<8x16xf32>
    %109 = tpu.matmul %107, %108, %cst_42 {dimension_numbers = #tpu.dot_dimension_numbers<[1], [0], [0], [1], [0, 0, 1, 1], [], []>} : vector<8x32xbf16>, vector<32x16xbf16>, vector<8x16xf32> -> vector<8x16xf32>
    %c0_43 = arith.constant 0 : index
    %c0_44 = arith.constant 0 : index
    %110 = vector.load %arg12[%c0_43, %c0_44] : memref<8x16xf32, #tpu.memory_space<vmem>>, vector<8x16xf32>
    tpu.vector_store %arg12[%c0_43, %c0_44], %109 {strides = array<i32>} : memref<8x16xf32, #tpu.memory_space<vmem>>, vector<8x16xf32>,
    %c0_45 = arith.constant 0 : index
    %c0_46 = arith.constant 0 : index
    %111 = vector.load %arg6[%c0_45, %c0_46] : memref<32x256xbf16, #tpu.memory_space<vmem>>, vector<32x256xbf16>
    %cst_47 = arith.constant dense<0.000000e+00> : vector<8x256xf32>
    %112 = tpu.matmul %107, %111, %cst_47 {dimension_numbers = #tpu.dot_dimension_numbers<[1], [0], [0], [1], [0, 0, 1, 1], [], []>} : vector<8x32xbf16>, vector<32x256xbf16>, vector<8x256xf32> -> vector<8x256xf32>
    %c0_48 = arith.constant 0 : index
    %c0_49 = arith.constant 0 : index
    %113 = vector.load %arg7[%c0_48, %c0_49] : memref<1x256xf32, #tpu.memory_space<vmem>>, vector<1x256xf32>
    %114 = vector.broadcast %113 : vector<1x256xf32> to vector<8x256xf32>
    %115 = arith.addf %112, %114 : vector<8x256xf32>
    %cst_50 = arith.constant 0.000000e+00 : f32
    %116 = vector.broadcast %cst_50 : f32 to vector<8x256xf32>
    %117 = arith.maximumf %115, %116 : vector<8x256xf32>
    %118 = arith.truncf %117 : vector<8x256xf32> to vector<8x256xbf16>
    %c0_51 = arith.constant 0 : index
    %c0_52 = arith.constant 0 : index
    %119 = vector.load %arg8[%c0_51, %c0_52] : memref<256x256xbf16, #tpu.memory_space<vmem>>, vector<256x256xbf16>
    %cst_53 = arith.constant dense<0.000000e+00> : vector<8x256xf32>
    %120 = tpu.matmul %118, %119, %cst_53 {dimension_numbers = #tpu.dot_dimension_numbers<[1], [0], [0], [1], [0, 0, 1, 1], [], []>} : vector<8x256xbf16>, vector<256x256xbf16>, vector<8x256xf32> -> vector<8x256xf32>
    %c0_54 = arith.constant 0 : index
    %c0_55 = arith.constant 0 : index
    %121 = vector.load %arg9[%c0_54, %c0_55] : memref<1x256xf32, #tpu.memory_space<vmem>>, vector<1x256xf32>
    %122 = vector.broadcast %121 : vector<1x256xf32> to vector<8x256xf32>
    %123 = arith.addf %120, %122 : vector<8x256xf32>
    %cst_56 = arith.constant 5.000000e-01 : f32
    %124 = vector.broadcast %cst_56 : f32 to vector<8x256xf32>
    %125 = arith.mulf %124, %123 : vector<8x256xf32>
    %126 = math.tanh %125 : vector<8x256xf32>
    %cst_57 = arith.constant 1.000000e+00 : f32
    %127 = vector.broadcast %cst_57 : f32 to vector<8x256xf32>
    %128 = arith.addf %126, %127 : vector<8x256xf32>
    %cst_58 = arith.constant 5.000000e-01 : f32
    %129 = vector.broadcast %cst_58 : f32 to vector<8x256xf32>
    %130 = arith.mulf %129, %128 : vector<8x256xf32>
    %c0_59 = arith.constant 0 : index
    %c0_60 = arith.constant 0 : index
    %131 = vector.load %arg11[%c0_59, %c0_60] : memref<8x256xf32, #tpu.memory_space<vmem>>, vector<8x256xf32>
    tpu.vector_store %arg11[%c0_59, %c0_60], %130 {strides = array<i32>} : memref<8x256xf32, #tpu.memory_space<vmem>>, vector<8x256xf32>,
    return
  }
  func.func @transform_0(%arg0: i32) -> (i32, i32) {
    %c0_i32 = arith.constant 0 : i32
    %c0_i32_0 = arith.constant 0 : i32
    return %arg0, %c0_i32 : i32, i32
  }
  func.func @transform_1(%arg0: i32) -> (i32, i32) {
    %c0_i32 = arith.constant 0 : i32
    %c0_i32_0 = arith.constant 0 : i32
    %c0_i32_1 = arith.constant 0 : i32
    return %c0_i32, %c0_i32_0 : i32, i32
  }
  func.func @transform_2(%arg0: i32) -> (i32, i32) {
    %c0_i32 = arith.constant 0 : i32
    %c0_i32_0 = arith.constant 0 : i32
    %c0_i32_1 = arith.constant 0 : i32
    return %c0_i32, %c0_i32_0 : i32, i32
  }
  func.func @transform_3(%arg0: i32) -> (i32, i32) {
    %c0_i32 = arith.constant 0 : i32
    %c0_i32_0 = arith.constant 0 : i32
    %c0_i32_1 = arith.constant 0 : i32
    return %c0_i32, %c0_i32_0 : i32, i32
  }
  func.func @transform_4(%arg0: i32) -> (i32, i32) {
    %c0_i32 = arith.constant 0 : i32
    %c0_i32_0 = arith.constant 0 : i32
    %c0_i32_1 = arith.constant 0 : i32
    return %c0_i32, %c0_i32_0 : i32, i32
  }
  func.func @transform_5(%arg0: i32) -> (i32, i32) {
    %c0_i32 = arith.constant 0 : i32
    %c0_i32_0 = arith.constant 0 : i32
    %c0_i32_1 = arith.constant 0 : i32
    return %c0_i32, %c0_i32_0 : i32, i32
  }
  func.func @transform_6(%arg0: i32) -> (i32, i32) {
    %c0_i32 = arith.constant 0 : i32
    %c0_i32_0 = arith.constant 0 : i32
    %c0_i32_1 = arith.constant 0 : i32
    return %c0_i32, %c0_i32_0 : i32, i32
  }
  func.func @transform_7(%arg0: i32) -> (i32, i32) {
    %c0_i32 = arith.constant 0 : i32
    %c0_i32_0 = arith.constant 0 : i32
    %c0_i32_1 = arith.constant 0 : i32
    return %c0_i32, %c0_i32_0 : i32, i32
  }
  func.func @transform_8(%arg0: i32) -> (i32, i32) {
    %c0_i32 = arith.constant 0 : i32
    %c0_i32_0 = arith.constant 0 : i32
    %c0_i32_1 = arith.constant 0 : i32
    return %c0_i32, %c0_i32_0 : i32, i32
  }
  func.func @transform_9(%arg0: i32) -> (i32, i32) {
    %c0_i32 = arith.constant 0 : i32
    %c0_i32_0 = arith.constant 0 : i32
    %c0_i32_1 = arith.constant 0 : i32
    return %c0_i32, %c0_i32_0 : i32, i32
  }
  func.func @transform_10(%arg0: i32) -> (i32, i32) {
    %c0_i32 = arith.constant 0 : i32
    %c0_i32_0 = arith.constant 0 : i32
    return %arg0, %c0_i32 : i32, i32
  }
  func.func @transform_11(%arg0: i32) -> (i32, i32) {
    %c0_i32 = arith.constant 0 : i32
    %c0_i32_0 = arith.constant 0 : i32
    return %arg0, %c0_i32 : i32, i32
  }
}

</mosaic_0001>

<llo_original>
// kernel: autoencoder_conv_forward.1
$region0: #{autoencoder_conv_forward.1}
  #allocation0 [shape = 'u32[]', space=smem, size = 0x4, offset = 0x4, fixed_abs, tag = 'smem constant byte address 0x4 - core index']
  #allocation1 [shape = 'u32[144,128]{1,0:T(1,128)}', space=vmem, size = 0x12000, scoped, tag = 'internal scratch']
  %s0 = inlined_call_operand.vmem [shape: f32[32,128], index: 0, kind: input, shape index: {}]
  %s1 = inlined_call_operand.vmem [shape: bf16[384,256], index: 1, kind: input, shape index: {}]
  %s2 = inlined_call_operand.vmem [shape: f32[1,256], index: 2, kind: input, shape index: {}]
  %s3 = inlined_call_operand.vmem [shape: bf16[768,32], index: 3, kind: input, shape index: {}]
  %s4 = inlined_call_operand.vmem [shape: f32[1,32], index: 4, kind: input, shape index: {}]
  %s5 = inlined_call_operand.vmem [shape: bf16[32,256], index: 5, kind: input, shape index: {}]
  %s6 = inlined_call_operand.vmem [shape: f32[1,256], index: 6, kind: input, shape index: {}]
  %s7 = inlined_call_operand.vmem [shape: bf16[256,256], index: 7, kind: input, shape index: {}]
  %s8 = inlined_call_operand.vmem [shape: f32[1,256], index: 8, kind: input, shape index: {}]
  %s9 = inlined_call_operand.vmem [shape: bf16[32,16], index: 9, kind: input, shape index: {}]
  %s10 = inlined_call_operand.vmem [shape: f32[8,256], index: 10, kind: output, shape index: {0}]
  %s11 = inlined_call_operand.vmem [shape: f32[8,16], index: 11, kind: output, shape index: {1}]
  %12 = xla_tuple %s10, %s11
  %s13 = sld [smem:[#allocation0]]
  $region58: #{autoencoder_conv_forward.1} parent=0
    _
  %s15 = ssub.s32 1, %s13
  %s16 = scalar_select 0, %s15, %s13
  // Predicated region
  $region2: #{autoencoder_conv_forward.1} parent=0 // pred_check
    _
  $region3: #{autoencoder_conv_forward.1} parent=0 // pred_check_branch
    %18 = sbr.rel (0) target = $region5
  $region4: #{autoencoder_conv_forward.1} parent=0 // pred_region
    _
  $region5: #{autoencoder_conv_forward.1} parent=0 // pred_fallthru
    _
  // Predicated region
  $region6: #{autoencoder_conv_forward.1} parent=0 // pred_check
    _
  $region7: #{autoencoder_conv_forward.1} parent=0 // pred_check_branch
    %20 = sbr.rel (0) target = $region9
  $region8: #{autoencoder_conv_forward.1} parent=0 // pred_region
    _
  $region9: #{autoencoder_conv_forward.1} parent=0 // pred_fallthru
    _
  // Predicated region
  $region10: #{autoencoder_conv_forward.1} parent=0 // pred_check
    _
  $region11: #{autoencoder_conv_forward.1} parent=0 // pred_check_branch
    %22 = sbr.rel (0) target = $region13
  $region12: #{autoencoder_conv_forward.1} parent=0 // pred_region
    _
  $region13: #{autoencoder_conv_forward.1} parent=0 // pred_fallthru
    _
  // Predicated region
  $region14: #{autoencoder_conv_forward.1} parent=0 // pred_check
    _
  $region15: #{autoencoder_conv_forward.1} parent=0 // pred_check_branch
    %24 = sbr.rel (0) target = $region17
  $region16: #{autoencoder_conv_forward.1} parent=0 // pred_region
    _
  $region17: #{autoencoder_conv_forward.1} parent=0 // pred_fallthru
    _
  // Predicated region
  $region18: #{autoencoder_conv_forward.1} parent=0 // pred_check
    _
  $region19: #{autoencoder_conv_forward.1} parent=0 // pred_check_branch
    %26 = sbr.rel (0) target = $region21
  $region20: #{autoencoder_conv_forward.1} parent=0 // pred_region
    _
  $region21: #{autoencoder_conv_forward.1} parent=0 // pred_fallthru
    _
  // Predicated region
  $region22: #{autoencoder_conv_forward.1} parent=0 // pred_check
    _
  $region23: #{autoencoder_conv_forward.1} parent=0 // pred_check_branch
    %28 = sbr.rel (0) target = $region25
  $region24: #{autoencoder_conv_forward.1} parent=0 // pred_region
    _
  $region25: #{autoencoder_conv_forward.1} parent=0 // pred_fallthru
    _
  // Predicated region
  $region26: #{autoencoder_conv_forward.1} parent=0 // pred_check
    _
  $region27: #{autoencoder_conv_forward.1} parent=0 // pred_check_branch
    %30 = sbr.rel (0) target = $region29
  $region28: #{autoencoder_conv_forward.1} parent=0 // pred_region
    _
  $region29: #{autoencoder_conv_forward.1} parent=0 // pred_fallthru
    _
  // Predicated region
  $region30: #{autoencoder_conv_forward.1} parent=0 // pred_check
    _
  $region31: #{autoencoder_conv_forward.1} parent=0 // pred_check_branch
    %32 = sbr.rel (0) target = $region33
  $region32: #{autoencoder_conv_forward.1} parent=0 // pred_region
    _
  $region33: #{autoencoder_conv_forward.1} parent=0 // pred_fallthru
    _
  // Predicated region
  $region34: #{autoencoder_conv_forward.1} parent=0 // pred_check
    _
  $region35: #{autoencoder_conv_forward.1} parent=0 // pred_check_branch
    %34 = sbr.rel (0) target = $region37
  $region36: #{autoencoder_conv_forward.1} parent=0 // pred_region
    _
  $region37: #{autoencoder_conv_forward.1} parent=0 // pred_fallthru
    _
  // Predicated region
  $region38: #{autoencoder_conv_forward.1} parent=0 // pred_check
    _
  $region39: #{autoencoder_conv_forward.1} parent=0 // pred_check_branch
    %36 = sbr.rel (0) target = $region41
  $region40: #{autoencoder_conv_forward.1} parent=0 // pred_region
    _
  $region41: #{autoencoder_conv_forward.1} parent=0 // pred_fallthru
    _
  %v38 = vld [vmem:[%s0] sm:$0xff]
  %v39 = vld [vmem:[%s0 + $0x8] sm:$0xff]
  %v40 = vld [vmem:[%s0 + $0x10] sm:$0xff]
  %v41 = vld [vmem:[%s0 + $0x18] sm:$0xff]
  %v42 = vrot.slane %v38, 7
  %v43 = vrot.slane %v39, 7
  %v44 = vrot.slane %v40, 7
  %v45 = vrot.slane %v41, 7
  %v46 = vlaneseq
  %v47 = vshrl.u32 %v46, 7
  %vm48 = vcmp.lt.s32.totalorder %v47, 1
  %v49 = vsel %vm48, %v44, %v45
  %v50 = vsel %vm48, %v43, %v44
  %v51 = vsel %vm48, %v42, %v43
  %v52 = vsel %vm48, %v45, %v42
  %v53 = vadd.s32 %v47, 8
  %v54 = vadd.s32 %v47, 16
  %v55 = vadd.s32 %v47, 24
  %v56 = vand.u32 %v47, 15
  %v57 = vand.u32 %v53, 15
  %v58 = vand.u32 %v54, 15
  %v59 = vand.u32 %v55, 15
  %vm60 = vcmp.eq.s32.totalorder %v56, 0
  %vm61 = vcmp.eq.s32.totalorder %v57, 0
  %vm62 = vcmp.eq.s32.totalorder %v58, 0
  %vm63 = vcmp.eq.s32.totalorder %v59, 0
  %v64 = vsel %vm60, 1, 0
  %v65 = vsel %vm61, 1, 0
  %v66 = vsel %vm62, 1, 0
  %v67 = vsel %vm63, 1, 0
  %vm68 = vcmp.eq.s32.totalorder %v64, 1
  %vm69 = vcmp.eq.s32.totalorder %v65, 1
  %vm70 = vcmp.eq.s32.totalorder %v66, 1
  %vm71 = vcmp.eq.s32.totalorder %v67, 1
  %v72 = vsel %vm68, 0.0, %v52
  %v73 = vsel %vm69, 0.0, %v51
  %v74 = vsel %vm70, 0.0, %v50
  %v75 = vsel %vm71, 0.0, %v49
  %v76 = vrot.slane %v38, 1
  %v77 = vrot.slane %v39, 1
  %v78 = vrot.slane %v40, 1
  %v79 = vrot.slane %v41, 1
  %vm80 = vcmp.lt.s32.totalorder %v47, 7
  %v81 = vsel %vm80, %v78, %v79
  %v82 = vsel %vm80, %v77, %v78
  %v83 = vsel %vm80, %v76, %v77
  %v84 = vsel %vm80, %v79, %v76
  %vm85 = vcmp.eq.s32.totalorder %v56, 15
  %vm86 = vcmp.eq.s32.totalorder %v57, 15
  %vm87 = vcmp.eq.s32.totalorder %v58, 15
  %vm88 = vcmp.eq.s32.totalorder %v59, 15
  %v89 = vsel %vm85, 1, 0
  %v90 = vsel %vm86, 1, 0
  %v91 = vsel %vm87, 1, 0
  %v92 = vsel %vm88, 1, 0
  %vm93 = vcmp.eq.s32.totalorder %v89, 1
  %vm94 = vcmp.eq.s32.totalorder %v90, 1
  %vm95 = vcmp.eq.s32.totalorder %v91, 1
  %vm96 = vcmp.eq.s32.totalorder %v92, 1
  %v97 = vsel %vm93, 0.0, %v83
  %v98 = vsel %vm94, 0.0, %v82
  %v99 = vsel %vm95, 0.0, %v81
  %v100 = vsel %vm96, 0.0, %v84
  %v101 = vpack.c.bf16 %v73, %v72
  %v102 = vpack.c.bf16 %v39, %v38
  %v103 = vpack.c.bf16 %v98, %v97
  %v104 = vpack.c.bf16 %v75, %v74
  %v105 = vpack.c.bf16 %v41, %v40
  %v106 = vpack.c.bf16 %v100, %v99
  %v107 = vld [vmem:[%s1] sm:$0xff]
  %v108 = vld [vmem:[%s1 + $0x8] sm:$0xff]
  %v109 = vld [vmem:[%s1 + $0x10] sm:$0xff]
  %v110 = vld [vmem:[%s1 + $0x18] sm:$0xff]
  %v111 = vld [vmem:[%s1 + $0x20] sm:$0xff]
  %v112 = vld [vmem:[%s1 + $0x28] sm:$0xff]
  %v113 = vld [vmem:[%s1 + $0x30] sm:$0xff]
  %v114 = vld [vmem:[%s1 + $0x38] sm:$0xff]
  %v115 = vld [vmem:[%s1 + $0x40] sm:$0xff]
  %v116 = vld [vmem:[%s1 + $0x48] sm:$0xff]
  %v117 = vld [vmem:[%s1 + $0x50] sm:$0xff]
  %v118 = vld [vmem:[%s1 + $0x58] sm:$0xff]
  %v119 = vld [vmem:[%s1 + $0x60] sm:$0xff]
  %v120 = vld [vmem:[%s1 + $0x68] sm:$0xff]
  %v121 = vld [vmem:[%s1 + $0x70] sm:$0xff]
  %v122 = vld [vmem:[%s1 + $0x78] sm:$0xff]
  %v123 = vld [vmem:[%s1 + $0x80] sm:$0xff]
  %v124 = vld [vmem:[%s1 + $0x88] sm:$0xff]
  %v125 = vld [vmem:[%s1 + $0x90] sm:$0xff]
  %v126 = vld [vmem:[%s1 + $0x98] sm:$0xff]
  %v127 = vld [vmem:[%s1 + $0xa0] sm:$0xff]
  %v128 = vld [vmem:[%s1 + $0xa8] sm:$0xff]
  %v129 = vld [vmem:[%s1 + $0xb0] sm:$0xff]
  %v130 = vld [vmem:[%s1 + $0xb8] sm:$0xff]
  %v131 = vld [vmem:[%s1 + $0xc0] sm:$0xff]
  %v132 = vld [vmem:[%s1 + $0xc8] sm:$0xff]
  %v133 = vld [vmem:[%s1 + $0xd0] sm:$0xff]
  %v134 = vld [vmem:[%s1 + $0xd8] sm:$0xff]
  %v135 = vld [vmem:[%s1 + $0xe0] sm:$0xff]
  %v136 = vld [vmem:[%s1 + $0xe8] sm:$0xff]
  %v137 = vld [vmem:[%s1 + $0xf0] sm:$0xff]
  %v138 = vld [vmem:[%s1 + $0xf8] sm:$0xff]
  %v139 = vld [vmem:[%s1 + $0x100] sm:$0xff]
  %v140 = vld [vmem:[%s1 + $0x108] sm:$0xff]
  %v141 = vld [vmem:[%s1 + $0x110] sm:$0xff]
  %v142 = vld [vmem:[%s1 + $0x118] sm:$0xff]
  %v143 = vld [vmem:[%s1 + $0x120] sm:$0xff]
  %v144 = vld [vmem:[%s1 + $0x128] sm:$0xff]
  %v145 = vld [vmem:[%s1 + $0x130] sm:$0xff]
  %v146 = vld [vmem:[%s1 + $0x138] sm:$0xff]
  %v147 = vld [vmem:[%s1 + $0x140] sm:$0xff]
  %v148 = vld [vmem:[%s1 + $0x148] sm:$0xff]
  %v149 = vld [vmem:[%s1 + $0x150] sm:$0xff]
  %v150 = vld [vmem:[%s1 + $0x158] sm:$0xff]
  %v151 = vld [vmem:[%s1 + $0x160] sm:$0xff]
  %v152 = vld [vmem:[%s1 + $0x168] sm:$0xff]
  %v153 = vld [vmem:[%s1 + $0x170] sm:$0xff]
  %v154 = vld [vmem:[%s1 + $0x178] sm:$0xff]
  %v155 = vld [vmem:[%s2] sm:$0x3]
  %v157 = vlaneseq
  %v158 = vshrl.u32 %v157, 7
  %v159 = vsub.s32 0, %v158
  %v160 = vrot.slane %v155, %v159
  %v161 = vlaneseq
  %v162 = vshrl.u32 %v161, 7
  %v163 = vsub.s32 1, %v162
  %v164 = vrot.slane %v155, %v163
  %v215 = vunpack.c.l.b16 %v107
  %v216 = vunpack.c.h.b16 %v107
  %v217 = vunpack.c.l.b16 %v108
  %v218 = vunpack.c.h.b16 %v108
  %v219 = vunpack.c.l.b16 %v109
  %v220 = vunpack.c.h.b16 %v109
  %v221 = vunpack.c.l.b16 %v110
  %v222 = vunpack.c.h.b16 %v110
  %v223 = vunpack.c.l.b16 %v111
  %v224 = vunpack.c.h.b16 %v111
  %v225 = vunpack.c.l.b16 %v112
  %v226 = vunpack.c.h.b16 %v112
  %v227 = vunpack.c.l.b16 %v113
  %v228 = vunpack.c.h.b16 %v113
  %v229 = vunpack.c.l.b16 %v114
  %v230 = vunpack.c.h.b16 %v114
  %v231 = vunpack.c.l.b16 %v115
  %v232 = vunpack.c.h.b16 %v115
  %v233 = vunpack.c.l.b16 %v116
  %v234 = vunpack.c.h.b16 %v116
  %v235 = vunpack.c.l.b16 %v117
  %v236 = vunpack.c.h.b16 %v117
  %v237 = vunpack.c.l.b16 %v118
  %v238 = vunpack.c.h.b16 %v118
  %v239 = vunpack.c.l.b16 %v119
  %v240 = vunpack.c.h.b16 %v119
  %v241 = vunpack.c.l.b16 %v120
  %v242 = vunpack.c.h.b16 %v120
  %v243 = vunpack.c.l.b16 %v121
  %v244 = vunpack.c.h.b16 %v121
  %v245 = vunpack.c.l.b16 %v122
  %v246 = vunpack.c.h.b16 %v122
  %v247 = vunpack.c.l.b16 %v123
  %v248 = vunpack.c.h.b16 %v123
  %v249 = vunpack.c.l.b16 %v124
  %v250 = vunpack.c.h.b16 %v124
  %v251 = vunpack.c.l.b16 %v125
  %v252 = vunpack.c.h.b16 %v125
  %v253 = vunpack.c.l.b16 %v126
  %v254 = vunpack.c.h.b16 %v126
  %v255 = vunpack.c.l.b16 %v127
  %v256 = vunpack.c.h.b16 %v127
  %v257 = vunpack.c.l.b16 %v128
  %v258 = vunpack.c.h.b16 %v128
  %v259 = vunpack.c.l.b16 %v129
  %v260 = vunpack.c.h.b16 %v129
  %v261 = vunpack.c.l.b16 %v130
  %v262 = vunpack.c.h.b16 %v130
  %v263 = vunpack.c.l.b16 %v131
  %v264 = vunpack.c.h.b16 %v131
  %v265 = vunpack.c.l.b16 %v132
  %v266 = vunpack.c.h.b16 %v132
  %v267 = vunpack.c.l.b16 %v133
  %v268 = vunpack.c.h.b16 %v133
  %v269 = vunpack.c.l.b16 %v134
  %v270 = vunpack.c.h.b16 %v134
  %v271 = vunpack.c.l.b16 %v135
  %v272 = vunpack.c.h.b16 %v135
  %v273 = vunpack.c.l.b16 %v136
  %v274 = vunpack.c.h.b16 %v136
  %v275 = vunpack.c.l.b16 %v137
  %v276 = vunpack.c.h.b16 %v137
  %v277 = vunpack.c.l.b16 %v138
  %v278 = vunpack.c.h.b16 %v138
  %v279 = vunpack.c.l.b16 %v139
  %v280 = vunpack.c.h.b16 %v139
  %v281 = vunpack.c.l.b16 %v140
  %v282 = vunpack.c.h.b16 %v140
  %v283 = vunpack.c.l.b16 %v141
  %v284 = vunpack.c.h.b16 %v141
  %v285 = vunpack.c.l.b16 %v142
  %v286 = vunpack.c.h.b16 %v142
  %v287 = vunpack.c.l.b16 %v143
  %v288 = vunpack.c.h.b16 %v143
  %v289 = vunpack.c.l.b16 %v144
  %v290 = vunpack.c.h.b16 %v144
  %v291 = vunpack.c.l.b16 %v145
  %v292 = vunpack.c.h.b16 %v145
  %v293 = vunpack.c.l.b16 %v146
  %v294 = vunpack.c.h.b16 %v146
  %v295 = vunpack.c.l.b16 %v147
  %v296 = vunpack.c.h.b16 %v147
  %v297 = vunpack.c.l.b16 %v148
  %v298 = vunpack.c.h.b16 %v148
  %v299 = vunpack.c.l.b16 %v149
  %v300 = vunpack.c.h.b16 %v149
  %v301 = vunpack.c.l.b16 %v150
  %v302 = vunpack.c.h.b16 %v150
  %v303 = vunpack.c.l.b16 %v151
  %v304 = vunpack.c.h.b16 %v151
  %v305 = vunpack.c.l.b16 %v152
  %v306 = vunpack.c.h.b16 %v152
  %v307 = vunpack.c.l.b16 %v153
  %v308 = vunpack.c.h.b16 %v153
  %v309 = vunpack.c.l.b16 %v154
  %v310 = vunpack.c.h.b16 %v154
  %v311 = vpack.c.b16 %v217, %v215
  %v312 = vpack.c.b16 %v218, %v216
  %v313 = vpack.c.b16 %v221, %v219
  %v314 = vpack.c.b16 %v222, %v220
  %v315 = vpack.c.b16 %v225, %v223
  %v316 = vpack.c.b16 %v226, %v224
  %v317 = vpack.c.b16 %v229, %v227
  %v318 = vpack.c.b16 %v230, %v228
  %v319 = vpack.c.b16 %v233, %v231
  %v320 = vpack.c.b16 %v234, %v232
  %v321 = vpack.c.b16 %v237, %v235
  %v322 = vpack.c.b16 %v238, %v236
  %v323 = vpack.c.b16 %v241, %v239
  %v324 = vpack.c.b16 %v242, %v240
  %v325 = vpack.c.b16 %v245, %v243
  %v326 = vpack.c.b16 %v246, %v244
  %v327 = vpack.c.b16 %v249, %v247
  %v328 = vpack.c.b16 %v250, %v248
  %v329 = vpack.c.b16 %v253, %v251
  %v330 = vpack.c.b16 %v254, %v252
  %v331 = vpack.c.b16 %v257, %v255
  %v332 = vpack.c.b16 %v258, %v256
  %v333 = vpack.c.b16 %v261, %v259
  %v334 = vpack.c.b16 %v262, %v260
  %v335 = vpack.c.b16 %v265, %v263
  %v336 = vpack.c.b16 %v266, %v264
  %v337 = vpack.c.b16 %v269, %v267
  %v338 = vpack.c.b16 %v270, %v268
  %v339 = vpack.c.b16 %v273, %v271
  %v340 = vpack.c.b16 %v274, %v272
  %v341 = vpack.c.b16 %v277, %v275
  %v342 = vpack.c.b16 %v278, %v276
  %v343 = vpack.c.b16 %v281, %v279
  %v344 = vpack.c.b16 %v282, %v280
  %v345 = vpack.c.b16 %v285, %v283
  %v346 = vpack.c.b16 %v286, %v284
  %v347 = vpack.c.b16 %v289, %v287
  %v348 = vpack.c.b16 %v290, %v288
  %v349 = vpack.c.b16 %v293, %v291
  %v350 = vpack.c.b16 %v294, %v292
  %v351 = vpack.c.b16 %v297, %v295
  %v352 = vpack.c.b16 %v298, %v296
  %v353 = vpack.c.b16 %v301, %v299
  %v354 = vpack.c.b16 %v302, %v300
  %v355 = vpack.c.b16 %v305, %v303
  %v356 = vpack.c.b16 %v306, %v304
  %v357 = vpack.c.b16 %v309, %v307
  %v358 = vpack.c.b16 %v310, %v308
  %407 = vmatprep.subr.bf16.mxu0 %v326
  %408 = vmatpush1.bf16.msra.mxu0 %v325
  %409 = vmatprep.subr.bf16.mxu0 %v324
  %410 = vmatpush1.bf16.msra.mxu0 %v323
  %411 = vmatprep.subr.bf16.mxu0 %v322
  %412 = vmatpush1.bf16.msra.mxu0 %v321
  %413 = vmatprep.subr.bf16.mxu0 %v320
  %414 = vmatpush1.bf16.msra.mxu0 %v319
  %415 = vmatprep.subr.bf16.mxu0 %v318
  %416 = vmatpush1.bf16.msra.mxu0 %v317
  %417 = vmatprep.subr.bf16.mxu0 %v316
  %418 = vmatpush1.bf16.msra.mxu0 %v315
  %419 = vmatprep.subr.bf16.mxu0 %v314
  %420 = vmatpush1.bf16.msra.mxu0 %v313
  %421 = vmatprep.subr.bf16.mxu0 %v312
  %422 = vmatpush1.bf16.msra.mxu0 %v311
  %423 = vmatprep.subr.bf16.mxu0 %v342
  %424 = vmatpush2.bf16.msra.mxu0 %v341
  %425 = vmatprep.subr.bf16.mxu0 %v340
  %426 = vmatpush2.bf16.msra.mxu0 %v339
  %427 = vmatprep.subr.bf16.mxu0 %v338
  %428 = vmatpush2.bf16.msra.mxu0 %v337
  %429 = vmatprep.subr.bf16.mxu0 %v336
  %430 = vmatpush2.bf16.msra.mxu0 %v335
  %431 = vmatprep.subr.bf16.mxu0 %v334
  %432 = vmatpush2.bf16.msra.mxu0 %v333
  %433 = vmatprep.subr.bf16.mxu0 %v332
  %434 = vmatpush2.bf16.msra.mxu0 %v331
  %435 = vmatprep.subr.bf16.mxu0 %v330
  %436 = vmatpush2.bf16.msra.mxu0 %v329
  %437 = vmatprep.subr.bf16.mxu0 %v328
  %438 = vmatpush2.bf16.msra.mxu0 %v327
  %439 = vmatprep.mubr.bf16.mxu0 %v102
  %440 = vmatmul.mubr.bf16.gmra.mxu0 %v101
  %v441 = vpop.f32.mrf.mxu0
  %v442 = vadd.f32 %v160, %v441
  %v443 = vpop.f32.mrf.mxu0
  %v444 = vadd.f32 %v164, %v443
  %v445 = vpop.f32.mrf.mxu0
  %v446 = vadd.f32 %v160, %v445
  %v447 = vpop.f32.mrf.mxu0
  %v448 = vadd.f32 %v164, %v447
  %449 = vmatprep.mubr.bf16.mxu0 %v105
  %450 = vmatmul.mubr.bf16.gmra.mxu0 %v104
  %v451 = vpop.f32.mrf.mxu0
  %v452 = vadd.f32 %v160, %v451
  %v453 = vpop.f32.mrf.mxu0
  %v454 = vadd.f32 %v164, %v453
  %v455 = vpop.f32.mrf.mxu0
  %v456 = vadd.f32 %v160, %v455
  %v457 = vpop.f32.mrf.mxu0
  %v458 = vadd.f32 %v164, %v457
  %459 = vdwg.mxu0
  %460 = vmatprep.subr.bf16.mxu0 %v358
  %461 = vmatpush1.bf16.msra.mxu0 %v357
  %462 = vmatprep.subr.bf16.mxu0 %v356
  %463 = vmatpush1.bf16.msra.mxu0 %v355
  %464 = vmatprep.subr.bf16.mxu0 %v354
  %465 = vmatpush1.bf16.msra.mxu0 %v353
  %466 = vmatprep.subr.bf16.mxu0 %v352
  %467 = vmatpush1.bf16.msra.mxu0 %v351
  %468 = vmatprep.subr.bf16.mxu0 %v350
  %469 = vmatpush1.bf16.msra.mxu0 %v349
  %470 = vmatprep.subr.bf16.mxu0 %v348
  %471 = vmatpush1.bf16.msra.mxu0 %v347
  %472 = vmatprep.subr.bf16.mxu0 %v346
  %473 = vmatpush1.bf16.msra.mxu0 %v345
  %474 = vmatprep.subr.bf16.mxu0 %v344
  %475 = vmatpush1.bf16.msra.mxu0 %v343
  %476 = vmatprep.subr.bf16.mxu0 0
  %477 = vmatpush2.bf16.msra.mxu0 0
  %478 = vmatprep.subr.bf16.mxu0 0
  %479 = vmatpush2.bf16.msra.mxu0 0
  %480 = vmatprep.subr.bf16.mxu0 0
  %481 = vmatpush2.bf16.msra.mxu0 0
  %482 = vmatprep.subr.bf16.mxu0 0
  %483 = vmatpush2.bf16.msra.mxu0 0
  %484 = vmatprep.subr.bf16.mxu0 0
  %485 = vmatpush2.bf16.msra.mxu0 0
  %486 = vmatprep.subr.bf16.mxu0 0
  %487 = vmatpush2.bf16.msra.mxu0 0
  %488 = vmatprep.subr.bf16.mxu0 0
  %489 = vmatpush2.bf16.msra.mxu0 0
  %490 = vmatprep.subr.bf16.mxu0 0
  %491 = vmatpush2.bf16.msra.mxu0 0
  %492 = vmatprep.mubr.bf16.mxu0 0
  %493 = vmatmul.mubr.bf16.gmra.mxu0 %v103
  %v494 = vpop.f32.mrf.mxu0
  %v495 = vadd.f32 %v442, %v494
  %v496 = vpop.f32.mrf.mxu0
  %v497 = vadd.f32 %v444, %v496
  %v498 = vpop.f32.mrf.mxu0
  %v499 = vadd.f32 %v446, %v498
  %v500 = vpop.f32.mrf.mxu0
  %v501 = vadd.f32 %v448, %v500
  %502 = vmatprep.mubr.bf16.mxu0 0
  %503 = vmatmul.mubr.bf16.gmra.mxu0 %v106
  %v504 = vpop.f32.mrf.mxu0
  %v505 = vadd.f32 %v452, %v504
  %v506 = vpop.f32.mrf.mxu0
  %v507 = vadd.f32 %v454, %v506
  %v508 = vpop.f32.mrf.mxu0
  %v509 = vadd.f32 %v456, %v508
  %v510 = vpop.f32.mrf.mxu0
  %v511 = vadd.f32 %v458, %v510
  %512 = vdwg.mxu0
  %v513 = vmax.f32 %v495, 0.0
  %v514 = vmax.f32 %v497, 0.0
  %v515 = vmax.f32 %v499, 0.0
  %v516 = vmax.f32 %v501, 0.0
  %v517 = vmax.f32 %v505, 0.0
  %v518 = vmax.f32 %v507, 0.0
  %v519 = vmax.f32 %v509, 0.0
  %v520 = vmax.f32 %v511, 0.0
  %521 = vrot.lane.b32.xlu0 %v513, 112
  %v522 = vpop.permute.xlu0 %521
  %523 = vrot.lane.b32.xlu0 %v515, 112
  %v524 = vpop.permute.xlu0 %523
  %525 = vrot.lane.b32.xlu0 %v517, 112
  %v526 = vpop.permute.xlu0 %525
  %527 = vrot.lane.b32.xlu0 %v519, 112
  %v528 = vpop.permute.xlu0 %527
  %529 = vrot.lane.b32.xlu0 %v514, 112
  %v530 = vpop.permute.xlu0 %529
  %531 = vrot.lane.b32.xlu0 %v516, 112
  %v532 = vpop.permute.xlu0 %531
  %533 = vrot.lane.b32.xlu0 %v518, 112
  %v534 = vpop.permute.xlu0 %533
  %535 = vrot.lane.b32.xlu0 %v520, 112
  %v536 = vpop.permute.xlu0 %535
  %v537 = vlaneseq
  %v538 = vand.u32 %v537, 127
  %vm539 = vcmp.lt.s32.totalorder %v538, 112
  %v540 = vsel %vm539, %v522, %v530
  %v541 = vsel %vm539, %v524, %v532
  %v542 = vsel %vm539, %v526, %v534
  %v543 = vsel %vm539, %v528, %v536
  %v544 = vsel %vm539, %v530, %v522
  %v545 = vsel %vm539, %v532, %v524
  %v546 = vsel %vm539, %v534, %v526
  %v547 = vsel %vm539, %v536, %v528
  %v548 = vmax.f32 %v513, %v540
  %v549 = vmax.f32 %v514, %v544
  %v550 = vmax.f32 %v515, %v541
  %v551 = vmax.f32 %v516, %v545
  %v552 = vmax.f32 %v517, %v542
  %v553 = vmax.f32 %v518, %v546
  %v554 = vmax.f32 %v519, %v543
  %v555 = vmax.f32 %v520, %v547
  %v556 = vpack.c.bf16 %v550, %v548
  %v557 = vpack.c.bf16 %v551, %v549
  %v558 = vpack.c.bf16 %v554, %v552
  %v559 = vpack.c.bf16 %v555, %v553
  %v560 = vmul.u32 %v47, 2
  %v561 = vmul.u32 %v53, 2
  %vm562 = vcmp.eq.s32.totalorder %v538, %v560
  %vm563 = vcmp.eq.s32.totalorder %v538, %v561
  %v564 = vsel %vm562, 1.0, 0.0
  %v565 = vsel %vm563, 1.0, 0.0
  %v566 = vpack.c.bf16 %v565, %v564
  %v567 = vadd.s32 %v560, 1
  %v568 = vadd.s32 %v561, 1
  %vm569 = vcmp.eq.s32.totalorder %v538, %v567
  %vm570 = vcmp.eq.s32.totalorder %v538, %v568
  %v571 = vsel %vm569, 1.0, 0.0
  %v572 = vsel %vm570, 1.0, 0.0
  %v573 = vpack.c.bf16 %v572, %v571
  %vm574 = vcmask 261120
  %v576 = vsel %vm574, %v566, 0
  %578 = vmatprep.subr.bf16.mxu0 0
  %579 = vmatpush1.bf16.msra.mxu0 0
  %580 = vmatprep.subr.bf16.mxu0 0
  %581 = vmatpush1.bf16.msra.mxu0 0
  %582 = vmatprep.subr.bf16.mxu0 0
  %583 = vmatpush1.bf16.msra.mxu0 0
  %584 = vmatprep.subr.bf16.mxu0 0
  %585 = vmatpush1.bf16.msra.mxu0 0
  %586 = vmatprep.subr.bf16.mxu0 0
  %587 = vmatpush1.bf16.msra.mxu0 0
  %588 = vmatprep.subr.bf16.mxu0 0
  %589 = vmatpush1.bf16.msra.mxu0 0
  %590 = vmatprep.subr.bf16.mxu0 %v559
  %591 = vmatpush1.bf16.msra.mxu0 %v558
  %592 = vmatprep.subr.bf16.mxu0 %v557
  %593 = vmatpush1.bf16.msra.mxu0 %v556
  %594 = vmatprep.subr.bf16.mxu0 0
  %595 = vmatpush2.bf16.msra.mxu0 0
  %596 = vmatprep.subr.bf16.mxu0 0
  %597 = vmatpush2.bf16.msra.mxu0 0
  %598 = vmatprep.subr.bf16.mxu0 0
  %599 = vmatpush2.bf16.msra.mxu0 0
  %600 = vmatprep.subr.bf16.mxu0 0
  %601 = vmatpush2.bf16.msra.mxu0 0
  %602 = vmatprep.subr.bf16.mxu0 0
  %603 = vmatpush2.bf16.msra.mxu0 0
  %604 = vmatprep.subr.bf16.mxu0 0
  %605 = vmatpush2.bf16.msra.mxu0 0
  %606 = vmatprep.subr.bf16.mxu0 0
  %607 = vmatpush2.bf16.msra.mxu0 0
  %608 = vmatprep.subr.bf16.mxu0 0
  %609 = vmatpush2.bf16.msra.mxu0 0
  %610 = vmatprep.mubr.bf16.mxu0 0
  %611 = vmatmul.mubr.bf16.gmra.mxu0 %v576
  %v612 = vpop.f32.mrf.mxu0
  %v613 = vadd.f32 0.0, %v612
  %v614 = vpop.f32.mrf.mxu0
  %v615 = vadd.f32 0.0, %v614
  %v616 = vpop.f32.mrf.mxu0
  %v617 = vadd.f32 0.0, %v616
  %v618 = vpop.f32.mrf.mxu0
  %v619 = vadd.f32 0.0, %v618
  %620 = vdwg.mxu0
  %v622 = vsel %vm574, %v573, 0
  %624 = vmatprep.subr.bf16.mxu0 0
  %625 = vmatpush1.bf16.msra.mxu0 0
  %626 = vmatprep.subr.bf16.mxu0 0
  %627 = vmatpush1.bf16.msra.mxu0 0
  %628 = vmatprep.subr.bf16.mxu0 0
  %629 = vmatpush1.bf16.msra.mxu0 0
  %630 = vmatprep.subr.bf16.mxu0 0
  %631 = vmatpush1.bf16.msra.mxu0 0
  %632 = vmatprep.subr.bf16.mxu0 0
  %633 = vmatpush1.bf16.msra.mxu0 0
  %634 = vmatprep.subr.bf16.mxu0 0
  %635 = vmatpush1.bf16.msra.mxu0 0
  %636 = vmatprep.subr.bf16.mxu0 %v559
  %637 = vmatpush1.bf16.msra.mxu0 %v558
  %638 = vmatprep.subr.bf16.mxu0 %v557
  %639 = vmatpush1.bf16.msra.mxu0 %v556
  %640 = vmatprep.subr.bf16.mxu0 0
  %641 = vmatpush2.bf16.msra.mxu0 0
  %642 = vmatprep.subr.bf16.mxu0 0
  %643 = vmatpush2.bf16.msra.mxu0 0
  %644 = vmatprep.subr.bf16.mxu0 0
  %645 = vmatpush2.bf16.msra.mxu0 0
  %646 = vmatprep.subr.bf16.mxu0 0
  %647 = vmatpush2.bf16.msra.mxu0 0
  %648 = vmatprep.subr.bf16.mxu0 0
  %649 = vmatpush2.bf16.msra.mxu0 0
  %650 = vmatprep.subr.bf16.mxu0 0
  %651 = vmatpush2.bf16.msra.mxu0 0
  %652 = vmatprep.subr.bf16.mxu0 0
  %653 = vmatpush2.bf16.msra.mxu0 0
  %654 = vmatprep.subr.bf16.mxu0 0
  %655 = vmatpush2.bf16.msra.mxu0 0
  %656 = vmatprep.mubr.bf16.mxu0 0
  %657 = vmatmul.mubr.bf16.gmra.mxu0 %v622
  %v658 = vpop.f32.mrf.mxu0
  %v659 = vadd.f32 0.0, %v658
  %v660 = vpop.f32.mrf.mxu0
  %v661 = vadd.f32 0.0, %v660
  %v662 = vpop.f32.mrf.mxu0
  %v663 = vadd.f32 0.0, %v662
  %v664 = vpop.f32.mrf.mxu0
  %v665 = vadd.f32 0.0, %v664
  %666 = vdwg.mxu0
  %v667 = vmax.f32 %v613, %v659
  %v668 = vmax.f32 %v615, %v661
  %v669 = vmax.f32 %v617, %v663
  %v670 = vmax.f32 %v619, %v665
  %v671 = vrot.slane %v667, 7
  %v672 = vrot.slane %v668, 7
  %v673 = vrot.slane %v669, 7
  %v674 = vrot.slane %v670, 7
  %v675 = vsel %vm48, %v671, %v673
  %v676 = vsel %vm48, %v672, %v674
  %v677 = vsel %vm48, %v673, %v671
  %v678 = vsel %vm48, %v674, %v672
  %v679 = vand.u32 %v47, 7
  %v680 = vand.u32 %v53, 7
  %vm681 = vcmp.eq.s32.totalorder %v679, 0
  %vm682 = vcmp.eq.s32.totalorder %v680, 0
  %v683 = vsel %vm681, 1, 0
  %v684 = vsel %vm682, 1, 0
  %vm685 = vcmp.eq.s32.totalorder %v683, 1
  %vm686 = vcmp.eq.s32.totalorder %v684, 1
  %v687 = vsel %vm685, 0.0, %v677
  %v688 = vsel %vm685, 0.0, %v678
  %v689 = vsel %vm686, 0.0, %v675
  %v690 = vsel %vm686, 0.0, %v676
  %v691 = vrot.slane %v667, 1
  %v692 = vrot.slane %v668, 1
  %v693 = vrot.slane %v669, 1
  %v694 = vrot.slane %v670, 1
  %v695 = vsel %vm80, %v691, %v693
  %v696 = vsel %vm80, %v692, %v694
  %v697 = vsel %vm80, %v693, %v691
  %v698 = vsel %vm80, %v694, %v692
  %vm699 = vcmp.eq.s32.totalorder %v679, 7
  %vm700 = vcmp.eq.s32.totalorder %v680, 7
  %v701 = vsel %vm699, 1, 0
  %v702 = vsel %vm700, 1, 0
  %vm703 = vcmp.eq.s32.totalorder %v701, 1
  %vm704 = vcmp.eq.s32.totalorder %v702, 1
  %v705 = vsel %vm703, 0.0, %v695
  %v706 = vsel %vm703, 0.0, %v696
  %v707 = vsel %vm704, 0.0, %v697
  %v708 = vsel %vm704, 0.0, %v698
  %v709 = vpack.c.bf16 %v689, %v687
  %v710 = vpack.c.bf16 %v690, %v688
  %v711 = vpack.c.bf16 %v669, %v667
  %v712 = vpack.c.bf16 %v670, %v668
  %v713 = vpack.c.bf16 %v707, %v705
  %v714 = vpack.c.bf16 %v708, %v706
  %v715 = vld [vmem:[%s3] sm:$0xf]
  %v716 = vld [vmem:[%s3 + $0x4] sm:$0xf]
  %v717 = vld [vmem:[%s3 + $0x8] sm:$0xf]
  %v718 = vld [vmem:[%s3 + $0xc] sm:$0xf]
  %v719 = vld [vmem:[%s3 + $0x10] sm:$0xf]
  %v720 = vld [vmem:[%s3 + $0x14] sm:$0xf]
  %v721 = vld [vmem:[%s3 + $0x18] sm:$0xf]
  %v722 = vld [vmem:[%s3 + $0x1c] sm:$0xf]
  %v723 = vld [vmem:[%s3 + $0x20] sm:$0xf]
  %v724 = vld [vmem:[%s3 + $0x24] sm:$0xf]
  %v725 = vld [vmem:[%s3 + $0x28] sm:$0xf]
  %v726 = vld [vmem:[%s3 + $0x2c] sm:$0xf]
  %v727 = vld [vmem:[%s3 + $0x30] sm:$0xf]
  %v728 = vld [vmem:[%s3 + $0x34] sm:$0xf]
  %v729 = vld [vmem:[%s3 + $0x38] sm:$0xf]
  %v730 = vld [vmem:[%s3 + $0x3c] sm:$0xf]
  %v731 = vld [vmem:[%s3 + $0x40] sm:$0xf]
  %v732 = vld [vmem:[%s3 + $0x44] sm:$0xf]
  %v733 = vld [vmem:[%s3 + $0x48] sm:$0xf]
  %v734 = vld [vmem:[%s3 + $0x4c] sm:$0xf]
  %v735 = vld [vmem:[%s3 + $0x50] sm:$0xf]
  %v736 = vld [vmem:[%s3 + $0x54] sm:$0xf]
  %v737 = vld [vmem:[%s3 + $0x58] sm:$0xf]
  %v738 = vld [vmem:[%s3 + $0x5c] sm:$0xf]
  %v739 = vld [vmem:[%s3 + $0x60] sm:$0xf]
  %v740 = vld [vmem:[%s3 + $0x64] sm:$0xf]
  %v741 = vld [vmem:[%s3 + $0x68] sm:$0xf]
  %v742 = vld [vmem:[%s3 + $0x6c] sm:$0xf]
  %v743 = vld [vmem:[%s3 + $0x70] sm:$0xf]
  %v744 = vld [vmem:[%s3 + $0x74] sm:$0xf]
  %v745 = vld [vmem:[%s3 + $0x78] sm:$0xf]
  %v746 = vld [vmem:[%s3 + $0x7c] sm:$0xf]
  %v747 = vld [vmem:[%s3 + $0x80] sm:$0xf]
  %v748 = vld [vmem:[%s3 + $0x84] sm:$0xf]
  %v749 = vld [vmem:[%s3 + $0x88] sm:$0xf]
  %v750 = vld [vmem:[%s3 + $0x8c] sm:$0xf]
  %v751 = vld [vmem:[%s3 + $0x90] sm:$0xf]
  %v752 = vld [vmem:[%s3 + $0x94] sm:$0xf]
  %v753 = vld [vmem:[%s3 + $0x98] sm:$0xf]
  %v754 = vld [vmem:[%s3 + $0x9c] sm:$0xf]
  %v755 = vld [vmem:[%s3 + $0xa0] sm:$0xf]
  %v756 = vld [vmem:[%s3 + $0xa4] sm:$0xf]
  %v757 = vld [vmem:[%s3 + $0xa8] sm:$0xf]
  %v758 = vld [vmem:[%s3 + $0xac] sm:$0xf]
  %v759 = vld [vmem:[%s3 + $0xb0] sm:$0xf]
  %v760 = vld [vmem:[%s3 + $0xb4] sm:$0xf]
  %v761 = vld [vmem:[%s3 + $0xb8] sm:$0xf]
  %v762 = vld [vmem:[%s3 + $0xbc] sm:$0xf]
  %v763 = vld [vmem:[%s3 + $0xc0] sm:$0xf]
  %v764 = vld [vmem:[%s3 + $0xc4] sm:$0xf]
  %v765 = vld [vmem:[%s3 + $0xc8] sm:$0xf]
  %v766 = vld [vmem:[%s3 + $0xcc] sm:$0xf]
  %v767 = vld [vmem:[%s3 + $0xd0] sm:$0xf]
  %v768 = vld [vmem:[%s3 + $0xd4] sm:$0xf]
  %v769 = vld [vmem:[%s3 + $0xd8] sm:$0xf]
  %v770 = vld [vmem:[%s3 + $0xdc] sm:$0xf]
  %v771 = vld [vmem:[%s3 + $0xe0] sm:$0xf]
  %v772 = vld [vmem:[%s3 + $0xe4] sm:$0xf]
  %v773 = vld [vmem:[%s3 + $0xe8] sm:$0xf]
  %v774 = vld [vmem:[%s3 + $0xec] sm:$0xf]
  %v775 = vld [vmem:[%s3 + $0xf0] sm:$0xf]
  %v776 = vld [vmem:[%s3 + $0xf4] sm:$0xf]
  %v777 = vld [vmem:[%s3 + $0xf8] sm:$0xf]
  %v778 = vld [vmem:[%s3 + $0xfc] sm:$0xf]
  %v779 = vld [vmem:[%s3 + $0x100] sm:$0xf]
  %v780 = vld [vmem:[%s3 + $0x104] sm:$0xf]
  %v781 = vld [vmem:[%s3 + $0x108] sm:$0xf]
  %v782 = vld [vmem:[%s3 + $0x10c] sm:$0xf]
  %v783 = vld [vmem:[%s3 + $0x110] sm:$0xf]
  %v784 = vld [vmem:[%s3 + $0x114] sm:$0xf]
  %v785 = vld [vmem:[%s3 + $0x118] sm:$0xf]
  %v786 = vld [vmem:[%s3 + $0x11c] sm:$0xf]
  %v787 = vld [vmem:[%s3 + $0x120] sm:$0xf]
  %v788 = vld [vmem:[%s3 + $0x124] sm:$0xf]
  %v789 = vld [vmem:[%s3 + $0x128] sm:$0xf]
  %v790 = vld [vmem:[%s3 + $0x12c] sm:$0xf]
  %v791 = vld [vmem:[%s3 + $0x130] sm:$0xf]
  %v792 = vld [vmem:[%s3 + $0x134] sm:$0xf]
  %v793 = vld [vmem:[%s3 + $0x138] sm:$0xf]
  %v794 = vld [vmem:[%s3 + $0x13c] sm:$0xf]
  %v795 = vld [vmem:[%s3 + $0x140] sm:$0xf]
  %v796 = vld [vmem:[%s3 + $0x144] sm:$0xf]
  %v797 = vld [vmem:[%s3 + $0x148] sm:$0xf]
  %v798 = vld [vmem:[%s3 + $0x14c] sm:$0xf]
  %v799 = vld [vmem:[%s3 + $0x150] sm:$0xf]
  %v800 = vld [vmem:[%s3 + $0x154] sm:$0xf]
  %v801 = vld [vmem:[%s3 + $0x158] sm:$0xf]
  %v802 = vld [vmem:[%s3 + $0x15c] sm:$0xf]
  %v803 = vld [vmem:[%s3 + $0x160] sm:$0xf]
  %v804 = vld [vmem:[%s3 + $0x164] sm:$0xf]
  %v805 = vld [vmem:[%s3 + $0x168] sm:$0xf]
  %v806 = vld [vmem:[%s3 + $0x16c] sm:$0xf]
  %v807 = vld [vmem:[%s3 + $0x170] sm:$0xf]
  %v808 = vld [vmem:[%s3 + $0x174] sm:$0xf]
  %v809 = vld [vmem:[%s3 + $0x178] sm:$0xf]
  %v810 = vld [vmem:[%s3 + $0x17c] sm:$0xf]
  %v811 = vld [vmem:[%s4] sm:$0x1]
  %v813 = vlaneseq
  %v814 = vshrl.u32 %v813, 7
  %v815 = vsub.s32 0, %v814
  %v816 = vrot.slane %v811, %v815
  %v914 = vunpack.c.l.b16 %v715
  %v915 = vunpack.c.l.b16 %v716
  %v916 = vunpack.c.l.b16 %v717
  %v917 = vunpack.c.l.b16 %v718
  %v918 = vunpack.c.l.b16 %v719
  %v919 = vunpack.c.l.b16 %v720
  %v920 = vunpack.c.l.b16 %v721
  %v921 = vunpack.c.l.b16 %v722
  %v922 = vunpack.c.l.b16 %v723
  %v923 = vunpack.c.l.b16 %v724
  %v924 = vunpack.c.l.b16 %v725
  %v925 = vunpack.c.l.b16 %v726
  %v926 = vunpack.c.l.b16 %v727
  %v927 = vunpack.c.l.b16 %v728
  %v928 = vunpack.c.l.b16 %v729
  %v929 = vunpack.c.l.b16 %v730
  %v930 = vunpack.c.l.b16 %v731
  %v931 = vunpack.c.l.b16 %v732
  %v932 = vunpack.c.l.b16 %v733
  %v933 = vunpack.c.l.b16 %v734
  %v934 = vunpack.c.l.b16 %v735
  %v935 = vunpack.c.l.b16 %v736
  %v936 = vunpack.c.l.b16 %v737
  %v937 = vunpack.c.l.b16 %v738
  %v938 = vunpack.c.l.b16 %v739
  %v939 = vunpack.c.l.b16 %v740
  %v940 = vunpack.c.l.b16 %v741
  %v941 = vunpack.c.l.b16 %v742
  %v942 = vunpack.c.l.b16 %v743
  %v943 = vunpack.c.l.b16 %v744
  %v944 = vunpack.c.l.b16 %v745
  %v945 = vunpack.c.l.b16 %v746
  %v946 = vunpack.c.l.b16 %v747
  %v947 = vunpack.c.l.b16 %v748
  %v948 = vunpack.c.l.b16 %v749
  %v949 = vunpack.c.l.b16 %v750
  %v950 = vunpack.c.l.b16 %v751
  %v951 = vunpack.c.l.b16 %v752
  %v952 = vunpack.c.l.b16 %v753
  %v953 = vunpack.c.l.b16 %v754
  %v954 = vunpack.c.l.b16 %v755
  %v955 = vunpack.c.l.b16 %v756
  %v956 = vunpack.c.l.b16 %v757
  %v957 = vunpack.c.l.b16 %v758
  %v958 = vunpack.c.l.b16 %v759
  %v959 = vunpack.c.l.b16 %v760
  %v960 = vunpack.c.l.b16 %v761
  %v961 = vunpack.c.l.b16 %v762
  %v962 = vunpack.c.l.b16 %v763
  %v963 = vunpack.c.l.b16 %v764
  %v964 = vunpack.c.l.b16 %v765
  %v965 = vunpack.c.l.b16 %v766
  %v966 = vunpack.c.l.b16 %v767
  %v967 = vunpack.c.l.b16 %v768
  %v968 = vunpack.c.l.b16 %v769
  %v969 = vunpack.c.l.b16 %v770
  %v970 = vunpack.c.l.b16 %v771
  %v971 = vunpack.c.l.b16 %v772
  %v972 = vunpack.c.l.b16 %v773
  %v973 = vunpack.c.l.b16 %v774
  %v974 = vunpack.c.l.b16 %v775
  %v975 = vunpack.c.l.b16 %v776
  %v976 = vunpack.c.l.b16 %v777
  %v977 = vunpack.c.l.b16 %v778
  %v978 = vunpack.c.l.b16 %v779
  %v979 = vunpack.c.l.b16 %v780
  %v980 = vunpack.c.l.b16 %v781
  %v981 = vunpack.c.l.b16 %v782
  %v982 = vunpack.c.l.b16 %v783
  %v983 = vunpack.c.l.b16 %v784
  %v984 = vunpack.c.l.b16 %v785
  %v985 = vunpack.c.l.b16 %v786
  %v986 = vunpack.c.l.b16 %v787
  %v987 = vunpack.c.l.b16 %v788
  %v988 = vunpack.c.l.b16 %v789
  %v989 = vunpack.c.l.b16 %v790
  %v990 = vunpack.c.l.b16 %v791
  %v991 = vunpack.c.l.b16 %v792
  %v992 = vunpack.c.l.b16 %v793
  %v993 = vunpack.c.l.b16 %v794
  %v994 = vunpack.c.l.b16 %v795
  %v995 = vunpack.c.l.b16 %v796
  %v996 = vunpack.c.l.b16 %v797
  %v997 = vunpack.c.l.b16 %v798
  %v998 = vunpack.c.l.b16 %v799
  %v999 = vunpack.c.l.b16 %v800
  %v1000 = vunpack.c.l.b16 %v801
  %v1001 = vunpack.c.l.b16 %v802
  %v1002 = vunpack.c.l.b16 %v803
  %v1003 = vunpack.c.l.b16 %v804
  %v1004 = vunpack.c.l.b16 %v805
  %v1005 = vunpack.c.l.b16 %v806
  %v1006 = vunpack.c.l.b16 %v807
  %v1007 = vunpack.c.l.b16 %v808
  %v1008 = vunpack.c.l.b16 %v809
  %v1009 = vunpack.c.l.b16 %v810
  %v1010 = vpack.c.b16 %v915, %v914
  %v1011 = vpack.c.b16 %v917, %v916
  %v1012 = vpack.c.b16 %v919, %v918
  %v1013 = vpack.c.b16 %v921, %v920
  %v1014 = vpack.c.b16 %v923, %v922
  %v1015 = vpack.c.b16 %v925, %v924
  %v1016 = vpack.c.b16 %v927, %v926
  %v1017 = vpack.c.b16 %v929, %v928
  %v1018 = vpack.c.b16 %v931, %v930
  %v1019 = vpack.c.b16 %v933, %v932
  %v1020 = vpack.c.b16 %v935, %v934
  %v1021 = vpack.c.b16 %v937, %v936
  %v1022 = vpack.c.b16 %v939, %v938
  %v1023 = vpack.c.b16 %v941, %v940
  %v1024 = vpack.c.b16 %v943, %v942
  %v1025 = vpack.c.b16 %v945, %v944
  %v1026 = vpack.c.b16 %v947, %v946
  %v1027 = vpack.c.b16 %v949, %v948
  %v1028 = vpack.c.b16 %v951, %v950
  %v1029 = vpack.c.b16 %v953, %v952
  %v1030 = vpack.c.b16 %v955, %v954
  %v1031 = vpack.c.b16 %v957, %v956
  %v1032 = vpack.c.b16 %v959, %v958
  %v1033 = vpack.c.b16 %v961, %v960
  %v1034 = vpack.c.b16 %v963, %v962
  %v1035 = vpack.c.b16 %v965, %v964
  %v1036 = vpack.c.b16 %v967, %v966
  %v1037 = vpack.c.b16 %v969, %v968
  %v1038 = vpack.c.b16 %v971, %v970
  %v1039 = vpack.c.b16 %v973, %v972
  %v1040 = vpack.c.b16 %v975, %v974
  %v1041 = vpack.c.b16 %v977, %v976
  %v1042 = vpack.c.b16 %v979, %v978
  %v1043 = vpack.c.b16 %v981, %v980
  %v1044 = vpack.c.b16 %v983, %v982
  %v1045 = vpack.c.b16 %v985, %v984
  %v1046 = vpack.c.b16 %v987, %v986
  %v1047 = vpack.c.b16 %v989, %v988
  %v1048 = vpack.c.b16 %v991, %v990
  %v1049 = vpack.c.b16 %v993, %v992
  %v1050 = vpack.c.b16 %v995, %v994
  %v1051 = vpack.c.b16 %v997, %v996
  %v1052 = vpack.c.b16 %v999, %v998
  %v1053 = vpack.c.b16 %v1001, %v1000
  %v1054 = vpack.c.b16 %v1003, %v1002
  %v1055 = vpack.c.b16 %v1005, %v1004
  %v1056 = vpack.c.b16 %v1007, %v1006
  %v1057 = vpack.c.b16 %v1009, %v1008
  %1106 = vmatprep.subr.bf16.mxu0 0
  %1107 = vmatpush1.bf16.msra.mxu0 %v1017
  %1108 = vmatprep.subr.bf16.mxu0 0
  %1109 = vmatpush1.bf16.msra.mxu0 %v1016
  %1110 = vmatprep.subr.bf16.mxu0 0
  %1111 = vmatpush1.bf16.msra.mxu0 %v1015
  %1112 = vmatprep.subr.bf16.mxu0 0
  %1113 = vmatpush1.bf16.msra.mxu0 %v1014
  %1114 = vmatprep.subr.bf16.mxu0 0
  %1115 = vmatpush1.bf16.msra.mxu0 %v1013
  %1116 = vmatprep.subr.bf16.mxu0 0
  %1117 = vmatpush1.bf16.msra.mxu0 %v1012
  %1118 = vmatprep.subr.bf16.mxu0 0
  %1119 = vmatpush1.bf16.msra.mxu0 %v1011
  %1120 = vmatprep.subr.bf16.mxu0 0
  %1121 = vmatpush1.bf16.msra.mxu0 %v1010
  %1122 = vmatprep.subr.bf16.mxu0 0
  %1123 = vmatpush2.bf16.msra.mxu0 %v1025
  %1124 = vmatprep.subr.bf16.mxu0 0
  %1125 = vmatpush2.bf16.msra.mxu0 %v1024
  %1126 = vmatprep.subr.bf16.mxu0 0
  %1127 = vmatpush2.bf16.msra.mxu0 %v1023
  %1128 = vmatprep.subr.bf16.mxu0 0
  %1129 = vmatpush2.bf16.msra.mxu0 %v1022
  %1130 = vmatprep.subr.bf16.mxu0 0
  %1131 = vmatpush2.bf16.msra.mxu0 %v1021
  %1132 = vmatprep.subr.bf16.mxu0 0
  %1133 = vmatpush2.bf16.msra.mxu0 %v1020
  %1134 = vmatprep.subr.bf16.mxu0 0
  %1135 = vmatpush2.bf16.msra.mxu0 %v1019
  %1136 = vmatprep.subr.bf16.mxu0 0
  %1137 = vmatpush2.bf16.msra.mxu0 %v1018
  %1138 = vmatprep.mubr.bf16.mxu0 %v710
  %1139 = vmatmul.mubr.bf16.gmra.mxu0 %v709
  %v1140 = vpop.f32.mrf.mxu0
  %v1141 = vadd.f32 %v816, %v1140
  %v1142 = vpop.f32.mrf.mxu0
  %v1143 = vpop.f32.mrf.mxu0
  %v1144 = vadd.f32 %v816, %v1143
  %v1145 = vpop.f32.mrf.mxu0
  %1146 = vdwg.mxu0
  %1147 = vmatprep.subr.bf16.mxu0 0
  %1148 = vmatpush1.bf16.msra.mxu0 %v1033
  %1149 = vmatprep.subr.bf16.mxu0 0
  %1150 = vmatpush1.bf16.msra.mxu0 %v1032
  %1151 = vmatprep.subr.bf16.mxu0 0
  %1152 = vmatpush1.bf16.msra.mxu0 %v1031
  %1153 = vmatprep.subr.bf16.mxu0 0
  %1154 = vmatpush1.bf16.msra.mxu0 %v1030
  %1155 = vmatprep.subr.bf16.mxu0 0
  %1156 = vmatpush1.bf16.msra.mxu0 %v1029
  %1157 = vmatprep.subr.bf16.mxu0 0
  %1158 = vmatpush1.bf16.msra.mxu0 %v1028
  %1159 = vmatprep.subr.bf16.mxu0 0
  %1160 = vmatpush1.bf16.msra.mxu0 %v1027
  %1161 = vmatprep.subr.bf16.mxu0 0
  %1162 = vmatpush1.bf16.msra.mxu0 %v1026
  %1163 = vmatprep.subr.bf16.mxu0 0
  %1164 = vmatpush2.bf16.msra.mxu0 %v1041
  %1165 = vmatprep.subr.bf16.mxu0 0
  %1166 = vmatpush2.bf16.msra.mxu0 %v1040
  %1167 = vmatprep.subr.bf16.mxu0 0
  %1168 = vmatpush2.bf16.msra.mxu0 %v1039
  %1169 = vmatprep.subr.bf16.mxu0 0
  %1170 = vmatpush2.bf16.msra.mxu0 %v1038
  %1171 = vmatprep.subr.bf16.mxu0 0
  %1172 = vmatpush2.bf16.msra.mxu0 %v1037
  %1173 = vmatprep.subr.bf16.mxu0 0
  %1174 = vmatpush2.bf16.msra.mxu0 %v1036
  %1175 = vmatprep.subr.bf16.mxu0 0
  %1176 = vmatpush2.bf16.msra.mxu0 %v1035
  %1177 = vmatprep.subr.bf16.mxu0 0
  %1178 = vmatpush2.bf16.msra.mxu0 %v1034
  %1179 = vmatprep.mubr.bf16.mxu0 %v712
  %1180 = vmatmul.mubr.bf16.gmra.mxu0 %v711
  %v1181 = vpop.f32.mrf.mxu0
  %v1182 = vadd.f32 %v1141, %v1181
  %v1183 = vpop.f32.mrf.mxu0
  %v1184 = vpop.f32.mrf.mxu0
  %v1185 = vadd.f32 %v1144, %v1184
  %v1186 = vpop.f32.mrf.mxu0
  %1187 = vdwg.mxu0
  %1188 = vmatprep.subr.bf16.mxu0 0
  %1189 = vmatpush1.bf16.msra.mxu0 %v1049
  %1190 = vmatprep.subr.bf16.mxu0 0
  %1191 = vmatpush1.bf16.msra.mxu0 %v1048
  %1192 = vmatprep.subr.bf16.mxu0 0
  %1193 = vmatpush1.bf16.msra.mxu0 %v1047
  %1194 = vmatprep.subr.bf16.mxu0 0
  %1195 = vmatpush1.bf16.msra.mxu0 %v1046
  %1196 = vmatprep.subr.bf16.mxu0 0
  %1197 = vmatpush1.bf16.msra.mxu0 %v1045
  %1198 = vmatprep.subr.bf16.mxu0 0
  %1199 = vmatpush1.bf16.msra.mxu0 %v1044
  %1200 = vmatprep.subr.bf16.mxu0 0
  %1201 = vmatpush1.bf16.msra.mxu0 %v1043
  %1202 = vmatprep.subr.bf16.mxu0 0
  %1203 = vmatpush1.bf16.msra.mxu0 %v1042
  %1204 = vmatprep.subr.bf16.mxu0 0
  %1205 = vmatpush2.bf16.msra.mxu0 %v1057
  %1206 = vmatprep.subr.bf16.mxu0 0
  %1207 = vmatpush2.bf16.msra.mxu0 %v1056
  %1208 = vmatprep.subr.bf16.mxu0 0
  %1209 = vmatpush2.bf16.msra.mxu0 %v1055
  %1210 = vmatprep.subr.bf16.mxu0 0
  %1211 = vmatpush2.bf16.msra.mxu0 %v1054
  %1212 = vmatprep.subr.bf16.mxu0 0
  %1213 = vmatpush2.bf16.msra.mxu0 %v1053
  %1214 = vmatprep.subr.bf16.mxu0 0
  %1215 = vmatpush2.bf16.msra.mxu0 %v1052
  %1216 = vmatprep.subr.bf16.mxu0 0
  %1217 = vmatpush2.bf16.msra.mxu0 %v1051
  %1218 = vmatprep.subr.bf16.mxu0 0
  %1219 = vmatpush2.bf16.msra.mxu0 %v1050
  %1220 = vmatprep.mubr.bf16.mxu0 %v714
  %1221 = vmatmul.mubr.bf16.gmra.mxu0 %v713
  %v1222 = vpop.f32.mrf.mxu0
  %v1223 = vadd.f32 %v1182, %v1222
  %v1224 = vpop.f32.mrf.mxu0
  %v1225 = vpop.f32.mrf.mxu0
  %v1226 = vadd.f32 %v1185, %v1225
  %v1227 = vpop.f32.mrf.mxu0
  %1228 = vdwg.mxu0
  %v1229 = vmax.f32 %v1223, 0.0
  %v1230 = vmax.f32 %v1226, 0.0
  %vm1231 = vcmask 1047808
  %1232 = vrot.lane.b32.xlu0 %v1229, 32
  %v1233 = vpop.permute.xlu0 %1232
  %v1234 = vsel %vm1231, %v1233, %v1229
  %1235 = vrot.lane.b32.xlu0 %v1230, 32
  %v1236 = vpop.permute.xlu0 %1235
  %v1237 = vsel %vm1231, %v1236, %v1230
  %1238 = vrot.lane.b32.xlu0 %v1234, 32
  %v1239 = vpop.permute.xlu0 %1238
  %1240 = vrot.lane.b32.xlu0 %v1237, 32
  %v1241 = vpop.permute.xlu0 %1240
  %v1242 = vsel %vm1231, %v1239, %v1229
  %v1243 = vsel %vm1231, %v1241, %v1230
  %1246 = vrot.lane.b32.xlu0 %v1242, 124
  %v1247 = vpop.permute.xlu0 %1246
  %1248 = vrot.lane.b32.xlu0 %v1243, 124
  %v1249 = vpop.permute.xlu0 %1248
  %v1252 = vmax.f32 %v1229, %v1247
  %v1253 = vmax.f32 %v1230, %v1249
  %v1254 = vpack.c.bf16 %v1253, %v1252
  %v1255 = vpack.c.bf16 %v564, %v564
  %v1256 = vpack.c.bf16 %v571, %v571
  %vm1257 = vcmask 130048
  %v1259 = vsel %vm1257, %v1255, 0
  %1261 = vmatprep.subr.bf16.mxu0 0
  %1262 = vmatpush1.bf16.msra.mxu0 0
  %1263 = vmatprep.subr.bf16.mxu0 0
  %1264 = vmatpush1.bf16.msra.mxu0 0
  %1265 = vmatprep.subr.bf16.mxu0 0
  %1266 = vmatpush1.bf16.msra.mxu0 0
  %1267 = vmatprep.subr.bf16.mxu0 0
  %1268 = vmatpush1.bf16.msra.mxu0 0
  %1269 = vmatprep.subr.bf16.mxu0 0
  %1270 = vmatpush1.bf16.msra.mxu0 0
  %1271 = vmatprep.subr.bf16.mxu0 0
  %1272 = vmatpush1.bf16.msra.mxu0 0
  %1273 = vmatprep.subr.bf16.mxu0 0
  %1274 = vmatpush1.bf16.msra.mxu0 0
  %1275 = vmatprep.subr.bf16.mxu0 0
  %1276 = vmatpush1.bf16.msra.mxu0 %v1254
  %1277 = vmatprep.subr.bf16.mxu0 0
  %1278 = vmatpush2.bf16.msra.mxu0 0
  %1279 = vmatprep.subr.bf16.mxu0 0
  %1280 = vmatpush2.bf16.msra.mxu0 0
  %1281 = vmatprep.subr.bf16.mxu0 0
  %1282 = vmatpush2.bf16.msra.mxu0 0
  %1283 = vmatprep.subr.bf16.mxu0 0
  %1284 = vmatpush2.bf16.msra.mxu0 0
  %1285 = vmatprep.subr.bf16.mxu0 0
  %1286 = vmatpush2.bf16.msra.mxu0 0
  %1287 = vmatprep.subr.bf16.mxu0 0
  %1288 = vmatpush2.bf16.msra.mxu0 0
  %1289 = vmatprep.subr.bf16.mxu0 0
  %1290 = vmatpush2.bf16.msra.mxu0 0
  %1291 = vmatprep.subr.bf16.mxu0 0
  %1292 = vmatpush2.bf16.msra.mxu0 0
  %1293 = vmatprep.mubr.bf16.mxu0 0
  %1294 = vmatmul.mubr.bf16.gmra.mxu0 %v1259
  %v1295 = vpop.f32.mrf.mxu0
  %v1296 = vadd.f32 0.0, %v1295
  %v1297 = vpop.f32.mrf.mxu0
  %v1298 = vpop.f32.mrf.mxu0
  %v1299 = vpop.f32.mrf.mxu0
  %1300 = vdwg.mxu0
  %v1302 = vsel %vm1257, %v1256, 0
  %1304 = vmatprep.subr.bf16.mxu0 0
  %1305 = vmatpush1.bf16.msra.mxu0 0
  %1306 = vmatprep.subr.bf16.mxu0 0
  %1307 = vmatpush1.bf16.msra.mxu0 0
  %1308 = vmatprep.subr.bf16.mxu0 0
  %1309 = vmatpush1.bf16.msra.mxu0 0
  %1310 = vmatprep.subr.bf16.mxu0 0
  %1311 = vmatpush1.bf16.msra.mxu0 0
  %1312 = vmatprep.subr.bf16.mxu0 0
  %1313 = vmatpush1.bf16.msra.mxu0 0
  %1314 = vmatprep.subr.bf16.mxu0 0
  %1315 = vmatpush1.bf16.msra.mxu0 0
  %1316 = vmatprep.subr.bf16.mxu0 0
  %1317 = vmatpush1.bf16.msra.mxu0 0
  %1318 = vmatprep.subr.bf16.mxu0 0
  %1319 = vmatpush1.bf16.msra.mxu0 %v1254
  %1320 = vmatprep.subr.bf16.mxu0 0
  %1321 = vmatpush2.bf16.msra.mxu0 0
  %1322 = vmatprep.subr.bf16.mxu0 0
  %1323 = vmatpush2.bf16.msra.mxu0 0
  %1324 = vmatprep.subr.bf16.mxu0 0
  %1325 = vmatpush2.bf16.msra.mxu0 0
  %1326 = vmatprep.subr.bf16.mxu0 0
  %1327 = vmatpush2.bf16.msra.mxu0 0
  %1328 = vmatprep.subr.bf16.mxu0 0
  %1329 = vmatpush2.bf16.msra.mxu0 0
  %1330 = vmatprep.subr.bf16.mxu0 0
  %1331 = vmatpush2.bf16.msra.mxu0 0
  %1332 = vmatprep.subr.bf16.mxu0 0
  %1333 = vmatpush2.bf16.msra.mxu0 0
  %1334 = vmatprep.subr.bf16.mxu0 0
  %1335 = vmatpush2.bf16.msra.mxu0 0
  %1336 = vmatprep.mubr.bf16.mxu0 0
  %1337 = vmatmul.mubr.bf16.gmra.mxu0 %v1302
  %v1338 = vpop.f32.mrf.mxu0
  %v1339 = vadd.f32 0.0, %v1338
  %v1340 = vpop.f32.mrf.mxu0
  %v1341 = vpop.f32.mrf.mxu0
  %v1342 = vpop.f32.mrf.mxu0
  %1343 = vdwg.mxu0
  %v1344 = vmax.f32 %v1296, %v1339
  %v1345 = vpack.c.bf16 %v1344, %v1344
  %v1346 = vld [vmem:[%s9] sm:$0xf]
  %v1347 = vld [vmem:[%s9 + $0x4] sm:$0xf]
  %v1348 = vld [vmem:[%s9 + $0x8] sm:$0xf]
  %v1349 = vld [vmem:[%s9 + $0xc] sm:$0xf]
  %v1354 = vunpack.c.l.b16 %v1346
  %v1355 = vunpack.c.l.b16 %v1347
  %v1356 = vunpack.c.l.b16 %v1348
  %v1357 = vunpack.c.l.b16 %v1349
  %v1358 = vpack.c.b16 %v1355, %v1354
  %v1359 = vpack.c.b16 %v1357, %v1356
  %v1363 = vsel %vm574, %v1345, 0
  %1365 = vmatprep.subr.bf16.mxu0 0
  %1366 = vmatpush1.bf16.msra.mxu0 0
  %1367 = vmatprep.subr.bf16.mxu0 0
  %1368 = vmatpush1.bf16.msra.mxu0 0
  %1369 = vmatprep.subr.bf16.mxu0 0
  %1370 = vmatpush1.bf16.msra.mxu0 0
  %1371 = vmatprep.subr.bf16.mxu0 0
  %1372 = vmatpush1.bf16.msra.mxu0 0
  %1373 = vmatprep.subr.bf16.mxu0 0
  %1374 = vmatpush1.bf16.msra.mxu0 0
  %1375 = vmatprep.subr.bf16.mxu0 0
  %1376 = vmatpush1.bf16.msra.mxu0 0
  %1377 = vmatprep.subr.bf16.mxu0 0
  %1378 = vmatpush1.bf16.msra.mxu0 %v1359
  %1379 = vmatprep.subr.bf16.mxu0 0
  %1380 = vmatpush1.bf16.msra.mxu0 %v1358
  %1381 = vmatprep.subr.bf16.mxu0 0
  %1382 = vmatpush2.bf16.msra.mxu0 0
  %1383 = vmatprep.subr.bf16.mxu0 0
  %1384 = vmatpush2.bf16.msra.mxu0 0
  %1385 = vmatprep.subr.bf16.mxu0 0
  %1386 = vmatpush2.bf16.msra.mxu0 0
  %1387 = vmatprep.subr.bf16.mxu0 0
  %1388 = vmatpush2.bf16.msra.mxu0 0
  %1389 = vmatprep.subr.bf16.mxu0 0
  %1390 = vmatpush2.bf16.msra.mxu0 0
  %1391 = vmatprep.subr.bf16.mxu0 0
  %1392 = vmatpush2.bf16.msra.mxu0 0
  %1393 = vmatprep.subr.bf16.mxu0 0
  %1394 = vmatpush2.bf16.msra.mxu0 0
  %1395 = vmatprep.subr.bf16.mxu0 0
  %1396 = vmatpush2.bf16.msra.mxu0 0
  %1397 = vmatprep.mubr.bf16.mxu0 0
  %1398 = vmatmul.mubr.bf16.gmra.mxu0 %v1363
  %v1399 = vpop.f32.mrf.mxu0
  %v1400 = vadd.f32 0.0, %v1399
  %v1401 = vpop.f32.mrf.mxu0
  %v1402 = vpop.f32.mrf.mxu0
  %v1403 = vpop.f32.mrf.mxu0
  %1404 = vdwg.mxu0
  %1405 = vst.msk [vmem:[%s11] sm:$0xff] %vm1257, %v1400
  %v1406 = vld [vmem:[%s5] sm:$0xff]
  %v1407 = vld [vmem:[%s5 + $0x8] sm:$0xff]
  %v1408 = vld [vmem:[%s5 + $0x10] sm:$0xff]
  %v1409 = vld [vmem:[%s5 + $0x18] sm:$0xff]
  %v1410 = vld [vmem:[%s6] sm:$0x3]
  %v1412 = vlaneseq
  %v1413 = vshrl.u32 %v1412, 7
  %v1414 = vsub.s32 0, %v1413
  %v1415 = vrot.slane %v1410, %v1414
  %v1416 = vlaneseq
  %v1417 = vshrl.u32 %v1416, 7
  %v1418 = vsub.s32 1, %v1417
  %v1419 = vrot.slane %v1410, %v1418
  %v1426 = vunpack.c.l.b16 %v1406
  %v1427 = vunpack.c.h.b16 %v1406
  %v1428 = vunpack.c.l.b16 %v1407
  %v1429 = vunpack.c.h.b16 %v1407
  %v1430 = vunpack.c.l.b16 %v1408
  %v1431 = vunpack.c.h.b16 %v1408
  %v1432 = vunpack.c.l.b16 %v1409
  %v1433 = vunpack.c.h.b16 %v1409
  %v1434 = vpack.c.b16 %v1428, %v1426
  %v1435 = vpack.c.b16 %v1429, %v1427
  %v1436 = vpack.c.b16 %v1432, %v1430
  %v1437 = vpack.c.b16 %v1433, %v1431
  %1442 = vmatprep.subr.bf16.mxu0 0
  %1443 = vmatpush1.bf16.msra.mxu0 0
  %1444 = vmatprep.subr.bf16.mxu0 0
  %1445 = vmatpush1.bf16.msra.mxu0 0
  %1446 = vmatprep.subr.bf16.mxu0 0
  %1447 = vmatpush1.bf16.msra.mxu0 0
  %1448 = vmatprep.subr.bf16.mxu0 0
  %1449 = vmatpush1.bf16.msra.mxu0 0
  %1450 = vmatprep.subr.bf16.mxu0 0
  %1451 = vmatpush1.bf16.msra.mxu0 0
  %1452 = vmatprep.subr.bf16.mxu0 0
  %1453 = vmatpush1.bf16.msra.mxu0 0
  %1454 = vmatprep.subr.bf16.mxu0 %v1437
  %1455 = vmatpush1.bf16.msra.mxu0 %v1436
  %1456 = vmatprep.subr.bf16.mxu0 %v1435
  %1457 = vmatpush1.bf16.msra.mxu0 %v1434
  %1458 = vmatprep.subr.bf16.mxu0 0
  %1459 = vmatpush2.bf16.msra.mxu0 0
  %1460 = vmatprep.subr.bf16.mxu0 0
  %1461 = vmatpush2.bf16.msra.mxu0 0
  %1462 = vmatprep.subr.bf16.mxu0 0
  %1463 = vmatpush2.bf16.msra.mxu0 0
  %1464 = vmatprep.subr.bf16.mxu0 0
  %1465 = vmatpush2.bf16.msra.mxu0 0
  %1466 = vmatprep.subr.bf16.mxu0 0
  %1467 = vmatpush2.bf16.msra.mxu0 0
  %1468 = vmatprep.subr.bf16.mxu0 0
  %1469 = vmatpush2.bf16.msra.mxu0 0
  %1470 = vmatprep.subr.bf16.mxu0 0
  %1471 = vmatpush2.bf16.msra.mxu0 0
  %1472 = vmatprep.subr.bf16.mxu0 0
  %1473 = vmatpush2.bf16.msra.mxu0 0
  %1474 = vmatprep.mubr.bf16.mxu0 0
  %1475 = vmatmul.mubr.bf16.gmra.mxu0 %v1363
  %v1476 = vpop.f32.mrf.mxu0
  %v1477 = vadd.f32 %v1415, %v1476
  %v1478 = vpop.f32.mrf.mxu0
  %v1479 = vadd.f32 %v1419, %v1478
  %v1480 = vpop.f32.mrf.mxu0
  %v1481 = vpop.f32.mrf.mxu0
  %1482 = vdwg.mxu0
  %v1483 = vmax.f32 %v1477, 0.0
  %v1484 = vmax.f32 %v1479, 0.0
  %v1485 = vpack.c.bf16 %v1483, %v1483
  %v1486 = vpack.c.bf16 %v1484, %v1484
  %v1487 = vld [vmem:[%s7] sm:$0xff]
  %v1488 = vld [vmem:[%s7 + $0x8] sm:$0xff]
  %v1489 = vld [vmem:[%s7 + $0x10] sm:$0xff]
  %v1490 = vld [vmem:[%s7 + $0x18] sm:$0xff]
  %v1491 = vld [vmem:[%s7 + $0x20] sm:$0xff]
  %v1492 = vld [vmem:[%s7 + $0x28] sm:$0xff]
  %v1493 = vld [vmem:[%s7 + $0x30] sm:$0xff]
  %v1494 = vld [vmem:[%s7 + $0x38] sm:$0xff]
  %v1495 = vld [vmem:[%s7 + $0x40] sm:$0xff]
  %v1496 = vld [vmem:[%s7 + $0x48] sm:$0xff]
  %v1497 = vld [vmem:[%s7 + $0x50] sm:$0xff]
  %v1498 = vld [vmem:[%s7 + $0x58] sm:$0xff]
  %v1499 = vld [vmem:[%s7 + $0x60] sm:$0xff]
  %v1500 = vld [vmem:[%s7 + $0x68] sm:$0xff]
  %v1501 = vld [vmem:[%s7 + $0x70] sm:$0xff]
  %v1502 = vld [vmem:[%s7 + $0x78] sm:$0xff]
  %v1503 = vld [vmem:[%s7 + $0x80] sm:$0xff]
  %v1504 = vld [vmem:[%s7 + $0x88] sm:$0xff]
  %v1505 = vld [vmem:[%s7 + $0x90] sm:$0xff]
  %v1506 = vld [vmem:[%s7 + $0x98] sm:$0xff]
  %v1507 = vld [vmem:[%s7 + $0xa0] sm:$0xff]
  %v1508 = vld [vmem:[%s7 + $0xa8] sm:$0xff]
  %v1509 = vld [vmem:[%s7 + $0xb0] sm:$0xff]
  %v1510 = vld [vmem:[%s7 + $0xb8] sm:$0xff]
  %v1511 = vld [vmem:[%s7 + $0xc0] sm:$0xff]
  %v1512 = vld [vmem:[%s7 + $0xc8] sm:$0xff]
  %v1513 = vld [vmem:[%s7 + $0xd0] sm:$0xff]
  %v1514 = vld [vmem:[%s7 + $0xd8] sm:$0xff]
  %v1515 = vld [vmem:[%s7 + $0xe0] sm:$0xff]
  %v1516 = vld [vmem:[%s7 + $0xe8] sm:$0xff]
  %v1517 = vld [vmem:[%s7 + $0xf0] sm:$0xff]
  %v1518 = vld [vmem:[%s7 + $0xf8] sm:$0xff]
  %v1519 = vld [vmem:[%s8] sm:$0x3]
  %v1521 = vlaneseq
  %v1522 = vshrl.u32 %v1521, 7
  %v1523 = vsub.s32 0, %v1522
  %v1524 = vrot.slane %v1519, %v1523
  %v1525 = vlaneseq
  %v1526 = vshrl.u32 %v1525, 7
  %v1527 = vsub.s32 1, %v1526
  %v1528 = vrot.slane %v1519, %v1527
  %v1563 = vunpack.c.l.b16 %v1487
  %v1564 = vunpack.c.h.b16 %v1487
  %v1565 = vunpack.c.l.b16 %v1488
  %v1566 = vunpack.c.h.b16 %v1488
  %v1567 = vunpack.c.l.b16 %v1489
  %v1568 = vunpack.c.h.b16 %v1489
  %v1569 = vunpack.c.l.b16 %v1490
  %v1570 = vunpack.c.h.b16 %v1490
  %v1571 = vunpack.c.l.b16 %v1491
  %v1572 = vunpack.c.h.b16 %v1491
  %v1573 = vunpack.c.l.b16 %v1492
  %v1574 = vunpack.c.h.b16 %v1492
  %v1575 = vunpack.c.l.b16 %v1493
  %v1576 = vunpack.c.h.b16 %v1493
  %v1577 = vunpack.c.l.b16 %v1494
  %v1578 = vunpack.c.h.b16 %v1494
  %v1579 = vunpack.c.l.b16 %v1495
  %v1580 = vunpack.c.h.b16 %v1495
  %v1581 = vunpack.c.l.b16 %v1496
  %v1582 = vunpack.c.h.b16 %v1496
  %v1583 = vunpack.c.l.b16 %v1497
  %v1584 = vunpack.c.h.b16 %v1497
  %v1585 = vunpack.c.l.b16 %v1498
  %v1586 = vunpack.c.h.b16 %v1498
  %v1587 = vunpack.c.l.b16 %v1499
  %v1588 = vunpack.c.h.b16 %v1499
  %v1589 = vunpack.c.l.b16 %v1500
  %v1590 = vunpack.c.h.b16 %v1500
  %v1591 = vunpack.c.l.b16 %v1501
  %v1592 = vunpack.c.h.b16 %v1501
  %v1593 = vunpack.c.l.b16 %v1502
  %v1594 = vunpack.c.h.b16 %v1502
  %v1595 = vunpack.c.l.b16 %v1503
  %v1596 = vunpack.c.h.b16 %v1503
  %v1597 = vunpack.c.l.b16 %v1504
  %v1598 = vunpack.c.h.b16 %v1504
  %v1599 = vunpack.c.l.b16 %v1505
  %v1600 = vunpack.c.h.b16 %v1505
  %v1601 = vunpack.c.l.b16 %v1506
  %v1602 = vunpack.c.h.b16 %v1506
  %v1603 = vunpack.c.l.b16 %v1507
  %v1604 = vunpack.c.h.b16 %v1507
  %v1605 = vunpack.c.l.b16 %v1508
  %v1606 = vunpack.c.h.b16 %v1508
  %v1607 = vunpack.c.l.b16 %v1509
  %v1608 = vunpack.c.h.b16 %v1509
  %v1609 = vunpack.c.l.b16 %v1510
  %v1610 = vunpack.c.h.b16 %v1510
  %v1611 = vunpack.c.l.b16 %v1511
  %v1612 = vunpack.c.h.b16 %v1511
  %v1613 = vunpack.c.l.b16 %v1512
  %v1614 = vunpack.c.h.b16 %v1512
  %v1615 = vunpack.c.l.b16 %v1513
  %v1616 = vunpack.c.h.b16 %v1513
  %v1617 = vunpack.c.l.b16 %v1514
  %v1618 = vunpack.c.h.b16 %v1514
  %v1619 = vunpack.c.l.b16 %v1515
  %v1620 = vunpack.c.h.b16 %v1515
  %v1621 = vunpack.c.l.b16 %v1516
  %v1622 = vunpack.c.h.b16 %v1516
  %v1623 = vunpack.c.l.b16 %v1517
  %v1624 = vunpack.c.h.b16 %v1517
  %v1625 = vunpack.c.l.b16 %v1518
  %v1626 = vunpack.c.h.b16 %v1518
  %v1627 = vpack.c.b16 %v1565, %v1563
  %v1628 = vpack.c.b16 %v1566, %v1564
  %v1629 = vpack.c.b16 %v1569, %v1567
  %v1630 = vpack.c.b16 %v1570, %v1568
  %v1631 = vpack.c.b16 %v1573, %v1571
  %v1632 = vpack.c.b16 %v1574, %v1572
  %v1633 = vpack.c.b16 %v1577, %v1575
  %v1634 = vpack.c.b16 %v1578, %v1576
  %v1635 = vpack.c.b16 %v1581, %v1579
  %v1636 = vpack.c.b16 %v1582, %v1580
  %v1637 = vpack.c.b16 %v1585, %v1583
  %v1638 = vpack.c.b16 %v1586, %v1584
  %v1639 = vpack.c.b16 %v1589, %v1587
  %v1640 = vpack.c.b16 %v1590, %v1588
  %v1641 = vpack.c.b16 %v1593, %v1591
  %v1642 = vpack.c.b16 %v1594, %v1592
  %v1643 = vpack.c.b16 %v1597, %v1595
  %v1644 = vpack.c.b16 %v1598, %v1596
  %v1645 = vpack.c.b16 %v1601, %v1599
  %v1646 = vpack.c.b16 %v1602, %v1600
  %v1647 = vpack.c.b16 %v1605, %v1603
  %v1648 = vpack.c.b16 %v1606, %v1604
  %v1649 = vpack.c.b16 %v1609, %v1607
  %v1650 = vpack.c.b16 %v1610, %v1608
  %v1651 = vpack.c.b16 %v1613, %v1611
  %v1652 = vpack.c.b16 %v1614, %v1612
  %v1653 = vpack.c.b16 %v1617, %v1615
  %v1654 = vpack.c.b16 %v1618, %v1616
  %v1655 = vpack.c.b16 %v1621, %v1619
  %v1656 = vpack.c.b16 %v1622, %v1620
  %v1657 = vpack.c.b16 %v1625, %v1623
  %v1658 = vpack.c.b16 %v1626, %v1624
  %1691 = vmatprep.subr.bf16.mxu0 %v1642
  %1692 = vmatpush1.bf16.msra.mxu0 %v1641
  %1693 = vmatprep.subr.bf16.mxu0 %v1640
  %1694 = vmatpush1.bf16.msra.mxu0 %v1639
  %1695 = vmatprep.subr.bf16.mxu0 %v1638
  %1696 = vmatpush1.bf16.msra.mxu0 %v1637
  %1697 = vmatprep.subr.bf16.mxu0 %v1636
  %1698 = vmatpush1.bf16.msra.mxu0 %v1635
  %1699 = vmatprep.subr.bf16.mxu0 %v1634
  %1700 = vmatpush1.bf16.msra.mxu0 %v1633
  %1701 = vmatprep.subr.bf16.mxu0 %v1632
  %1702 = vmatpush1.bf16.msra.mxu0 %v1631
  %1703 = vmatprep.subr.bf16.mxu0 %v1630
  %1704 = vmatpush1.bf16.msra.mxu0 %v1629
  %1705 = vmatprep.subr.bf16.mxu0 %v1628
  %1706 = vmatpush1.bf16.msra.mxu0 %v1627
  %1707 = vmatprep.subr.bf16.mxu0 %v1658
  %1708 = vmatpush2.bf16.msra.mxu0 %v1657
  %1709 = vmatprep.subr.bf16.mxu0 %v1656
  %1710 = vmatpush2.bf16.msra.mxu0 %v1655
  %1711 = vmatprep.subr.bf16.mxu0 %v1654
  %1712 = vmatpush2.bf16.msra.mxu0 %v1653
  %1713 = vmatprep.subr.bf16.mxu0 %v1652
  %1714 = vmatpush2.bf16.msra.mxu0 %v1651
  %1715 = vmatprep.subr.bf16.mxu0 %v1650
  %1716 = vmatpush2.bf16.msra.mxu0 %v1649
  %1717 = vmatprep.subr.bf16.mxu0 %v1648
  %1718 = vmatpush2.bf16.msra.mxu0 %v1647
  %1719 = vmatprep.subr.bf16.mxu0 %v1646
  %1720 = vmatpush2.bf16.msra.mxu0 %v1645
  %1721 = vmatprep.subr.bf16.mxu0 %v1644
  %1722 = vmatpush2.bf16.msra.mxu0 %v1643
  %1723 = vmatprep.mubr.bf16.mxu0 %v1486
  %1724 = vmatmul.mubr.bf16.gmra.mxu0 %v1485
  %v1725 = vpop.f32.mrf.mxu0
  %v1726 = vadd.f32 %v1524, %v1725
  %v1727 = vpop.f32.mrf.mxu0
  %v1728 = vadd.f32 %v1528, %v1727
  %v1729 = vpop.f32.mrf.mxu0
  %v1730 = vpop.f32.mrf.mxu0
  %1731 = vdwg.mxu0
  %v1732 = vmul.f32 %v1726, 0.5
  %v1733 = vmul.f32 %v1728, 0.5
  %v1734 = vtanh.pop %v1732
  %v1735 = vtanh.pop %v1733
  %v1736 = vadd.f32 %v1734, 1.0
  %v1737 = vadd.f32 %v1735, 1.0
  %v1738 = vmul.f32 %v1736, 0.5
  %v1739 = vmul.f32 %v1737, 0.5
  %1740 = vst [vmem:[%s10] sm:$0xff] %v1738
  %1741 = vst [vmem:[%s10 + $0x8] sm:$0xff] %v1739
  // Predicated region
  $region42: #{autoencoder_conv_forward.1} parent=0 // pred_check
    _
  $region43: #{autoencoder_conv_forward.1} parent=0 // pred_check_branch
    %1743 = sbr.rel (0) target = $region45
  $region44: #{autoencoder_conv_forward.1} parent=0 // pred_region
    _
  $region45: #{autoencoder_conv_forward.1} parent=0 // pred_fallthru
    _
  // Predicated region
  $region46: #{autoencoder_conv_forward.1} parent=0 // pred_check
    _
  $region47: #{autoencoder_conv_forward.1} parent=0 // pred_check_branch
    %1745 = sbr.rel (0) target = $region49
  $region48: #{autoencoder_conv_forward.1} parent=0 // pred_region
    _
  $region49: #{autoencoder_conv_forward.1} parent=0 // pred_fallthru
    _
  // Predicated region
  $region50: #{autoencoder_conv_forward.1} parent=0 // pred_check
    _
  $region51: #{autoencoder_conv_forward.1} parent=0 // pred_check_branch
    %1747 = sbr.rel (0) target = $region53
  $region52: #{autoencoder_conv_forward.1} parent=0 // pred_region
    _
  $region53: #{autoencoder_conv_forward.1} parent=0 // pred_fallthru
    _
  // Predicated region
  $region54: #{autoencoder_conv_forward.1} parent=0 // pred_check
    _
  $region55: #{autoencoder_conv_forward.1} parent=0 // pred_check_branch
    %1749 = sbr.rel (0) target = $region57
  $region56: #{autoencoder_conv_forward.1} parent=0 // pred_region
    _
  $region57: #{autoencoder_conv_forward.1} parent=0 // pred_fallthru
    _

</llo_original>
